<compile_context>
chip_gen: v6e
topology: v6e:2x2x1
jax: 0.10.0
libtpu: 0.0.40
codegen_flags: <defaults>
</compile_context>

<pallas_src>
import functools

import jax
import jax.numpy as jnp
from jax.experimental import pallas as pl
from jax.experimental.pallas import tpu as pltpu

# ---------------------------------------------------------------------------
# Model hyper-parameters (module hard-codes feature splits 588 / 384)
# ---------------------------------------------------------------------------
PES_DIM = 588
PES_PAD = 640          # 5 * 128: unmasked K dimension for the big LSTM matmul
PROT_DIM = 384
NUM_LAYERS = 2
LSTM_HIDDEN = 32
OUT_CHANNELS = 8

N_NODES = 16           # small stand-in for the hard-coded 3600 nodes
N_EDGES = 40

_GATE_IDX = {"i": 0, "f": 1, "g": 2, "o": 3}   # PyTorch LSTM gate row order
_FUSED_GATE_ORDER = ("i", "f", "o", "g")       # sigmoid gates first, tanh last


# ---------------------------------------------------------------------------
# Fused forward kernel: BiLSTM (2 layers, both directions) + 2x GCNConv
# ---------------------------------------------------------------------------
def _pmesp_fused_kernel(pes_ref, prot_ref, ahat_ref,
                        h0_ref, c0_ref,
                        wih1_ref, whh1_ref, b1_ref,
                        wih2_ref, whh2_ref, b2_ref,
                        gw1p_ref, gw1x_ref, gb1_ref, gw2_ref, gb2_ref,
                        out_ref, *, hidden):
    h2w = 2 * hidden      # 64
    h6w = 6 * hidden      # 192

    def bilstm_step(x_bf, h0_bf, c0_f32, wih, whh, b):
        # Fused gate layout: [ i_f|i_b | f_f|f_b | o_f|o_b | g_f|g_b ]
        # (weights pre-transposed + pre-permuted; whh is direction
        #  block-diagonal, so h_fwd only feeds fwd gates and vice versa).
        # bf16 MXU operands, f32 accumulation; gate nonlinearities in f32.
        gates = (jnp.dot(x_bf, wih, preferred_element_type=jnp.float32)
                 + jnp.dot(h0_bf, whh, preferred_element_type=jnp.float32)
                 + b)
        s = jax.nn.sigmoid(gates[:, :h6w])     # one [N, 6H] f32 sigmoid slab
        g = jnp.tanh(gates[:, h6w:])           # one [N, 2H] f32 tanh slab
        i_g = s[:, 0:h2w]
        f_g = s[:, h2w:2 * h2w]
        o_g = s[:, 2 * h2w:3 * h2w]
        c = f_g * c0_f32 + i_g * g
        return o_g * jnp.tanh(c)               # f32 [N, 2H] = [h_fwd | h_bwd]

    # seq_len == 1 (module unsqueezes dim 0), so one cell step per layer and
    # the forward/backward directions coincide; both run in one fused matmul.
    # NOTE: this fusion is only valid for seq_len == 1.
    h1 = bilstm_step(pes_ref[...], h0_ref[0], c0_ref[0],
                     wih1_ref[...], whh1_ref[...], b1_ref[...])
    x_p = bilstm_step(h1.astype(jnp.bfloat16), h0_ref[1], c0_ref[1],
                      wih2_ref[...], whh2_ref[...], b2_ref[...])

    # GCNConv 1 (ReLU) and GCNConv 2, fully in VMEM.  out = Â @ (X @ W) + b.
    # gw1 is pre-split (prot / x_p halves) with the /100 scale folded into the
    # x_p half, so no concat slab and no explicit scale.
    # TODO(synk): torch.nn.Dropout(p=0.1) — eval-mode identity here.
    xw1 = (jnp.dot(prot_ref[...], gw1p_ref[...], preferred_element_type=jnp.float32)
           + jnp.dot(x_p.astype(jnp.bfloat16), gw1x_ref[...],
                     preferred_element_type=jnp.float32))
    a_hat = ahat_ref[...]                                   # bf16 [N, N]
    x1 = jnp.maximum(
        jnp.dot(a_hat, xw1.astype(jnp.bfloat16),
                preferred_element_type=jnp.float32) + gb1_ref[...],
        0.0)
    xw2 = jnp.dot(x1.astype(jnp.bfloat16), gw2_ref[...],
                  preferred_element_type=jnp.float32)
    out_ref[...] = (jnp.dot(a_hat, xw2.astype(jnp.bfloat16),
                            preferred_element_type=jnp.float32)
                    + gb2_ref[...])


def pmesp_forward(x, a_hat, params):
    n = x.shape[0]
    assert params["h0"].shape[1] == n, "h0/c0 batch (node count) must equal N"

    # One-time column split + zero-pad to 640 + bf16 cast (outside the kernel).
    pes = jnp.pad(x[:, :PES_DIM], ((0, 0), (0, PES_PAD - PES_DIM)))
    pes = pes.astype(jnp.bfloat16)
    prot = x[:, PES_DIM:].astype(jnp.bfloat16)

    operands = (pes, prot, a_hat,
                params["h0"], params["c0"],
                params["wih"][0], params["whh"][0], params["b"][0],
                params["wih"][1], params["whh"][1], params["b"][1],
                params["gw1_prot"], params["gw1_xp"], params["gb1"],
                params["gw2"], params["gb2"])

    h = LSTM_HIDDEN
    flops = 2 * n * (PES_PAD * 8 * h            # layer-1 input gates
                     + 2 * h * 8 * h            # layer-1 hidden gates
                     + 2 * (2 * h * 8 * h)      # layer-2 gates
                     + (PROT_DIM + 2 * h) * 2 * OUT_CHANNELS   # XW1
                     + n * 2 * OUT_CHANNELS                    # Â @ XW1
                     + 2 * OUT_CHANNELS * OUT_CHANNELS         # XW2
                     + n * OUT_CHANNELS)                       # Â @ XW2
    transcendentals = NUM_LAYERS * n * (6 * h + 2 * h + 2 * h)
    bytes_accessed = (sum(int(op.size) * op.dtype.itemsize for op in operands)
                      + n * OUT_CHANNELS * 4)

    vmem = pl.BlockSpec(memory_space=pltpu.MemorySpace.VMEM)
    kernel = functools.partial(_pmesp_fused_kernel, hidden=h)
    return pl.pallas_call(
        kernel,
        out_shape=jax.ShapeDtypeStruct((n, OUT_CHANNELS), jnp.float32),
        in_specs=[vmem] * len(operands),
        out_specs=vmem,
        # 48 MiB: leaves headroom on v7x (64 MiB physical/TC); plenty on
        # v5e/v6e (128 MiB) and far above this shape's actual footprint.
        compiler_params=pltpu.CompilerParams(vmem_limit_bytes=48 * 1024 * 1024),
        cost_estimate=pl.CostEstimate(flops=int(flops),
                                      transcendentals=int(transcendentals),
                                      bytes_accessed=int(bytes_accessed)),
    )(*operands)


# ---------------------------------------------------------------------------
# Offline parameter plumbing (weight fusion / transposition / gate reorder)
# ---------------------------------------------------------------------------
def _fuse_bilstm_weights(fwd, bwd, hidden):
    """Fuse both directions of one BiLSTM layer into pre-transposed matrices.

    Column layout (width 8H): [ i_f | i_b | f_f | f_b | o_f | o_b | g_f | g_b ]
    so sigmoid gates form one contiguous 6H slab and tanh the trailing 2H slab.
    """
    wih_f, whh_f, bih_f, bhh_f = fwd
    wih_b, whh_b, bih_b, bhh_b = bwd
    H = hidden

    def rows(w, gate):
        k = _GATE_IDX[gate]
        return w[k * H:(k + 1) * H, :]

    zeros = jnp.zeros((H, H), jnp.float32)
    wih_cols, whh_cols, b_cols = [], [], []
    for gate in _FUSED_GATE_ORDER:
        k = _GATE_IDX[gate]
        wih_cols += [rows(wih_f, gate).T, rows(wih_b, gate).T]
        whh_cols += [jnp.concatenate([rows(whh_f, gate).T, zeros], axis=0),
                     jnp.concatenate([zeros, rows(whh_b, gate).T], axis=0)]
        b_cols += [(bih_f + bhh_f)[k * H:(k + 1) * H],
                   (bih_b + bhh_b)[k * H:(k + 1) * H]]
    wih = jnp.concatenate(wih_cols, axis=1)            # [in, 8H]
    whh = jnp.concatenate(whh_cols, axis=1)            # [2H, 8H] block-diagonal
    b = jnp.concatenate(b_cols).reshape(1, 8 * H)      # [1, 8H]
    return wih, whh, b


def init_params(key, num_nodes):
    keys = jax.random.split(key, 48)
    ki = iter(keys)
    params = {}

    layer_inputs = [PES_DIM, 2 * LSTM_HIDDEN]
    wih_fused, whh_fused, b_fused = [], [], []
    for layer in range(NUM_LAYERS):
        in_size = layer_inputs[layer]
        per_dir = []
        for _ in range(2):  # forward / backward direction
            wih = 0.1 * jax.random.normal(next(ki), (4 * LSTM_HIDDEN, in_size), jnp.float32)
            whh = 0.1 * jax.random.normal(next(ki), (4 * LSTM_HIDDEN, LSTM_HIDDEN), jnp.float32)
            bih = 0.1 * jax.random.normal(next(ki), (4 * LSTM_HIDDEN,), jnp.float32)
            bhh = 0.1 * jax.random.normal(next(ki), (4 * LSTM_HIDDEN,), jnp.float32)
            per_dir.append((wih, whh, bih, bhh))
        wf, hf, bf = _fuse_bilstm_weights(per_dir[0], per_dir[1], LSTM_HIDDEN)
        if layer == 0:  # zero-pad K: 588 -> 640 so no masked tail vregs
            wf = jnp.pad(wf, ((0, PES_PAD - PES_DIM), (0, 0)))
        wih_fused.append(wf.astype(jnp.bfloat16))      # bf16 MXU operands
        whh_fused.append(hf.astype(jnp.bfloat16))
        b_fused.append(bf)                             # bias stays f32
    params["wih"], params["whh"], params["b"] = wih_fused, whh_fused, b_fused

    # Fixed random initial states (module's self.h0 / self.c0), batch = N.
    # Stored per layer as [fwd | bwd] concat -> [NUM_LAYERS, N, 2H].
    # h0 only feeds the gate matmul -> bf16; c0 is elementwise-only -> f32.
    h0 = jax.random.normal(next(ki), (NUM_LAYERS * 2, num_nodes, LSTM_HIDDEN), jnp.float32)
    c0 = jax.random.normal(next(ki), (NUM_LAYERS * 2, num_nodes, LSTM_HIDDEN), jnp.float32)
    params["h0"] = jnp.concatenate([h0[0::2], h0[1::2]], axis=2).astype(jnp.bfloat16)
    params["c0"] = jnp.concatenate([c0[0::2], c0[1::2]], axis=2)

    # GCNConv layers, stored pre-transposed as [in, out]; gw1 pre-split into
    # the protein half and the x_p half with the /100 scale folded in.
    in1 = PROT_DIM + 2 * LSTM_HIDDEN
    w1 = 0.1 * jax.random.normal(next(ki), (2 * OUT_CHANNELS, in1), jnp.float32)
    b1 = 0.1 * jax.random.normal(next(ki), (2 * OUT_CHANNELS,), jnp.float32)
    w2 = 0.1 * jax.random.normal(next(ki), (OUT_CHANNELS, 2 * OUT_CHANNELS), jnp.float32)
    b2 = 0.1 * jax.random.normal(next(ki), (OUT_CHANNELS,), jnp.float32)
    w1t = w1.T                                                     # [448, 16]
    params["gw1_prot"] = w1t[:PROT_DIM, :].astype(jnp.bfloat16)    # [384, 16]
    params["gw1_xp"] = (w1t[PROT_DIM:, :] * 0.01).astype(jnp.bfloat16)  # [64, 16]
    params["gb1"] = b1.reshape(1, -1)
    params["gw2"] = w2.T.astype(jnp.bfloat16)
    params["gb2"] = b2.reshape(1, -1)
    return params


def gcn_norm_adj(edge_index, num_nodes):
    """Dense Â = D^{-1/2} (A + I) D^{-1/2} (PyG GCNConv convention, src->dst),
    built in f32 and stored bf16 (MXU operand).  Loop-invariant for a fixed
    graph — build once, reuse across forwards."""
    src = jnp.concatenate([edge_index[0], jnp.arange(num_nodes, dtype=jnp.int32)])
    dst = jnp.concatenate([edge_index[1], jnp.arange(num_nodes, dtype=jnp.int32)])
    adense = jnp.zeros((num_nodes, num_nodes), jnp.float32).at[dst, src].add(1.0)
    deg = adense.sum(axis=1)  # in-degree (incl. self loop)
    dinv = jnp.where(deg > 0, 1.0 / jnp.sqrt(deg), 0.0)
    return (dinv[:, None] * adense * dinv[None, :]).astype(jnp.bfloat16)


# ---------------------------------------------------------------------------
if __name__ == "__main__":
    key = jax.random.PRNGKey(0)
    k_x, k_e, k_p = jax.random.split(key, 3)

    x = jax.random.normal(k_x, (N_NODES, PES_DIM + PROT_DIM), jnp.float32)
    edge_index = jax.random.randint(k_e, (2, N_EDGES), 0, N_NODES, dtype=jnp.int32)
    params = init_params(k_p, N_NODES)

    # Â hoisted out of the per-forward path (precompute/cache per graph).
    a_hat = gcn_norm_adj(edge_index, N_NODES)

    fwd = jax.jit(pmesp_forward)
    out = jax.block_until_ready(fwd(x, a_hat, params))
    assert out.shape == (N_NODES, OUT_CHANNELS)
    assert bool(jnp.all(jnp.isfinite(out)))
    print("KERNEL_OK")
</pallas_src>

<mosaic_0001>
module attributes {stable_mosaic.version = 11 : i64} {
  func.func @_pmesp_fused_kernel(%arg0: memref<16x640xbf16, #tpu.memory_space<vmem>>, %arg1: memref<16x384xbf16, #tpu.memory_space<vmem>>, %arg2: memref<16x16xbf16, #tpu.memory_space<vmem>>, %arg3: memref<2x16x64xbf16, #tpu.memory_space<vmem>>, %arg4: memref<2x16x64xf32, #tpu.memory_space<vmem>>, %arg5: memref<640x256xbf16, #tpu.memory_space<vmem>>, %arg6: memref<64x256xbf16, #tpu.memory_space<vmem>>, %arg7: memref<1x256xf32, #tpu.memory_space<vmem>>, %arg8: memref<64x256xbf16, #tpu.memory_space<vmem>>, %arg9: memref<64x256xbf16, #tpu.memory_space<vmem>>, %arg10: memref<1x256xf32, #tpu.memory_space<vmem>>, %arg11: memref<384x16xbf16, #tpu.memory_space<vmem>>, %arg12: memref<64x16xbf16, #tpu.memory_space<vmem>>, %arg13: memref<1x16xf32, #tpu.memory_space<vmem>>, %arg14: memref<16x8xbf16, #tpu.memory_space<vmem>>, %arg15: memref<1x8xf32, #tpu.memory_space<vmem>>, %arg16: memref<16x8xf32, #tpu.memory_space<vmem>>) attributes {dimension_semantics = [], scalar_prefetch = 0 : i64, scratch_operands = 0 : i64, tpu.core_type = #tpu.core_type<tc>} {
    %c0 = arith.constant 0 : index
    %c0_0 = arith.constant 0 : index
    %0 = vector.load %arg0[%c0, %c0_0] : memref<16x640xbf16, #tpu.memory_space<vmem>>, vector<16x640xbf16>
    %c0_1 = arith.constant 0 : index
    %c0_2 = arith.constant 0 : index
    %c0_3 = arith.constant 0 : index
    %1 = vector.load %arg3[%c0_1, %c0_2, %c0_3] : memref<2x16x64xbf16, #tpu.memory_space<vmem>>, vector<1x16x64xbf16>
    %2 = vector.shape_cast %1 : vector<1x16x64xbf16> to vector<16x64xbf16>
    %c0_4 = arith.constant 0 : index
    %c0_5 = arith.constant 0 : index
    %c0_6 = arith.constant 0 : index
    %3 = vector.load %arg4[%c0_4, %c0_5, %c0_6] : memref<2x16x64xf32, #tpu.memory_space<vmem>>, vector<1x16x64xf32>
    %4 = vector.shape_cast %3 : vector<1x16x64xf32> to vector<16x64xf32>
    %c0_7 = arith.constant 0 : index
    %c0_8 = arith.constant 0 : index
    %5 = vector.load %arg5[%c0_7, %c0_8] : memref<640x256xbf16, #tpu.memory_space<vmem>>, vector<640x256xbf16>
    %c0_9 = arith.constant 0 : index
    %c0_10 = arith.constant 0 : index
    %6 = vector.load %arg6[%c0_9, %c0_10] : memref<64x256xbf16, #tpu.memory_space<vmem>>, vector<64x256xbf16>
    %c0_11 = arith.constant 0 : index
    %c0_12 = arith.constant 0 : index
    %7 = vector.load %arg7[%c0_11, %c0_12] : memref<1x256xf32, #tpu.memory_space<vmem>>, vector<1x256xf32>
    %cst = arith.constant dense<0.000000e+00> : vector<16x256xf32>
    %8 = tpu.matmul %0, %5, %cst {dimension_numbers = #tpu.dot_dimension_numbers<[1], [0], [0], [1], [0, 0, 1, 1], [], []>} : vector<16x640xbf16>, vector<640x256xbf16>, vector<16x256xf32> -> vector<16x256xf32>
    %cst_13 = arith.constant dense<0.000000e+00> : vector<16x256xf32>
    %9 = tpu.matmul %2, %6, %cst_13 {dimension_numbers = #tpu.dot_dimension_numbers<[1], [0], [0], [1], [0, 0, 1, 1], [], []>} : vector<16x64xbf16>, vector<64x256xbf16>, vector<16x256xf32> -> vector<16x256xf32>
    %10 = arith.addf %8, %9 : vector<16x256xf32>
    %11 = vector.broadcast %7 : vector<1x256xf32> to vector<16x256xf32>
    %12 = arith.addf %10, %11 : vector<16x256xf32>
    %13 = vector.extract_strided_slice %12 {offsets = [0, 0], sizes = [16, 192], strides = [1, 1]} : vector<16x256xf32> to vector<16x192xf32>
    %14 = arith.negf %13 : vector<16x192xf32>
    %15 = math.exp %14 : vector<16x192xf32>
    %cst_14 = arith.constant 1.000000e+00 : f32
    %16 = vector.broadcast %cst_14 : f32 to vector<16x192xf32>
    %17 = arith.addf %16, %15 : vector<16x192xf32>
    %18 = arith.divf %16, %17 : vector<16x192xf32>
    %19 = vector.extract_strided_slice %12 {offsets = [0, 192], sizes = [16, 64], strides = [1, 1]} : vector<16x256xf32> to vector<16x64xf32>
    %20 = math.tanh %19 : vector<16x64xf32>
    %21 = vector.extract_strided_slice %18 {offsets = [0, 0], sizes = [16, 64], strides = [1, 1]} : vector<16x192xf32> to vector<16x64xf32>
    %22 = vector.extract_strided_slice %18 {offsets = [0, 64], sizes = [16, 64], strides = [1, 1]} : vector<16x192xf32> to vector<16x64xf32>
    %23 = vector.extract_strided_slice %18 {offsets = [0, 128], sizes = [16, 64], strides = [1, 1]} : vector<16x192xf32> to vector<16x64xf32>
    %24 = arith.mulf %22, %4 : vector<16x64xf32>
    %25 = arith.mulf %21, %20 : vector<16x64xf32>
    %26 = arith.addf %24, %25 : vector<16x64xf32>
    %27 = math.tanh %26 : vector<16x64xf32>
    %28 = arith.mulf %23, %27 : vector<16x64xf32>
    %29 = arith.truncf %28 : vector<16x64xf32> to vector<16x64xbf16>
    %c1 = arith.constant 1 : index
    %c0_15 = arith.constant 0 : index
    %c0_16 = arith.constant 0 : index
    %30 = vector.load %arg3[%c1, %c0_15, %c0_16] : memref<2x16x64xbf16, #tpu.memory_space<vmem>>, vector<1x16x64xbf16>
    %31 = vector.shape_cast %30 : vector<1x16x64xbf16> to vector<16x64xbf16>
    %c1_17 = arith.constant 1 : index
    %c0_18 = arith.constant 0 : index
    %c0_19 = arith.constant 0 : index
    %32 = vector.load %arg4[%c1_17, %c0_18, %c0_19] : memref<2x16x64xf32, #tpu.memory_space<vmem>>, vector<1x16x64xf32>
    %33 = vector.shape_cast %32 : vector<1x16x64xf32> to vector<16x64xf32>
    %c0_20 = arith.constant 0 : index
    %c0_21 = arith.constant 0 : index
    %34 = vector.load %arg8[%c0_20, %c0_21] : memref<64x256xbf16, #tpu.memory_space<vmem>>, vector<64x256xbf16>
    %c0_22 = arith.constant 0 : index
    %c0_23 = arith.constant 0 : index
    %35 = vector.load %arg9[%c0_22, %c0_23] : memref<64x256xbf16, #tpu.memory_space<vmem>>, vector<64x256xbf16>
    %c0_24 = arith.constant 0 : index
    %c0_25 = arith.constant 0 : index
    %36 = vector.load %arg10[%c0_24, %c0_25] : memref<1x256xf32, #tpu.memory_space<vmem>>, vector<1x256xf32>
    %cst_26 = arith.constant dense<0.000000e+00> : vector<16x256xf32>
    %37 = tpu.matmul %29, %34, %cst_26 {dimension_numbers = #tpu.dot_dimension_numbers<[1], [0], [0], [1], [0, 0, 1, 1], [], []>} : vector<16x64xbf16>, vector<64x256xbf16>, vector<16x256xf32> -> vector<16x256xf32>
    %cst_27 = arith.constant dense<0.000000e+00> : vector<16x256xf32>
    %38 = tpu.matmul %31, %35, %cst_27 {dimension_numbers = #tpu.dot_dimension_numbers<[1], [0], [0], [1], [0, 0, 1, 1], [], []>} : vector<16x64xbf16>, vector<64x256xbf16>, vector<16x256xf32> -> vector<16x256xf32>
    %39 = arith.addf %37, %38 : vector<16x256xf32>
    %40 = vector.broadcast %36 : vector<1x256xf32> to vector<16x256xf32>
    %41 = arith.addf %39, %40 : vector<16x256xf32>
    %42 = vector.extract_strided_slice %41 {offsets = [0, 0], sizes = [16, 192], strides = [1, 1]} : vector<16x256xf32> to vector<16x192xf32>
    %43 = arith.negf %42 : vector<16x192xf32>
    %44 = math.exp %43 : vector<16x192xf32>
    %cst_28 = arith.constant 1.000000e+00 : f32
    %45 = vector.broadcast %cst_28 : f32 to vector<16x192xf32>
    %46 = arith.addf %45, %44 : vector<16x192xf32>
    %47 = arith.divf %45, %46 : vector<16x192xf32>
    %48 = vector.extract_strided_slice %41 {offsets = [0, 192], sizes = [16, 64], strides = [1, 1]} : vector<16x256xf32> to vector<16x64xf32>
    %49 = math.tanh %48 : vector<16x64xf32>
    %50 = vector.extract_strided_slice %47 {offsets = [0, 0], sizes = [16, 64], strides = [1, 1]} : vector<16x192xf32> to vector<16x64xf32>
    %51 = vector.extract_strided_slice %47 {offsets = [0, 64], sizes = [16, 64], strides = [1, 1]} : vector<16x192xf32> to vector<16x64xf32>
    %52 = vector.extract_strided_slice %47 {offsets = [0, 128], sizes = [16, 64], strides = [1, 1]} : vector<16x192xf32> to vector<16x64xf32>
    %53 = arith.mulf %51, %33 : vector<16x64xf32>
    %54 = arith.mulf %50, %49 : vector<16x64xf32>
    %55 = arith.addf %53, %54 : vector<16x64xf32>
    %56 = math.tanh %55 : vector<16x64xf32>
    %57 = arith.mulf %52, %56 : vector<16x64xf32>
    %c0_29 = arith.constant 0 : index
    %c0_30 = arith.constant 0 : index
    %58 = vector.load %arg1[%c0_29, %c0_30] : memref<16x384xbf16, #tpu.memory_space<vmem>>, vector<16x384xbf16>
    %c0_31 = arith.constant 0 : index
    %c0_32 = arith.constant 0 : index
    %59 = vector.load %arg11[%c0_31, %c0_32] : memref<384x16xbf16, #tpu.memory_space<vmem>>, vector<384x16xbf16>
    %cst_33 = arith.constant dense<0.000000e+00> : vector<16x16xf32>
    %60 = tpu.matmul %58, %59, %cst_33 {dimension_numbers = #tpu.dot_dimension_numbers<[1], [0], [0], [1], [0, 0, 1, 1], [], []>} : vector<16x384xbf16>, vector<384x16xbf16>, vector<16x16xf32> -> vector<16x16xf32>
    %61 = arith.truncf %57 : vector<16x64xf32> to vector<16x64xbf16>
    %c0_34 = arith.constant 0 : index
    %c0_35 = arith.constant 0 : index
    %62 = vector.load %arg12[%c0_34, %c0_35] : memref<64x16xbf16, #tpu.memory_space<vmem>>, vector<64x16xbf16>
    %cst_36 = arith.constant dense<0.000000e+00> : vector<16x16xf32>
    %63 = tpu.matmul %61, %62, %cst_36 {dimension_numbers = #tpu.dot_dimension_numbers<[1], [0], [0], [1], [0, 0, 1, 1], [], []>} : vector<16x64xbf16>, vector<64x16xbf16>, vector<16x16xf32> -> vector<16x16xf32>
    %64 = arith.addf %60, %63 : vector<16x16xf32>
    %c0_37 = arith.constant 0 : index
    %c0_38 = arith.constant 0 : index
    %65 = vector.load %arg2[%c0_37, %c0_38] : memref<16x16xbf16, #tpu.memory_space<vmem>>, vector<16x16xbf16>
    %66 = arith.truncf %64 : vector<16x16xf32> to vector<16x16xbf16>
    %cst_39 = arith.constant dense<0.000000e+00> : vector<16x16xf32>
    %67 = tpu.matmul %65, %66, %cst_39 {dimension_numbers = #tpu.dot_dimension_numbers<[1], [0], [0], [1], [0, 0, 1, 1], [], []>} : vector<16x16xbf16>, vector<16x16xbf16>, vector<16x16xf32> -> vector<16x16xf32>
    %c0_40 = arith.constant 0 : index
    %c0_41 = arith.constant 0 : index
    %68 = vector.load %arg13[%c0_40, %c0_41] : memref<1x16xf32, #tpu.memory_space<vmem>>, vector<1x16xf32>
    %69 = vector.broadcast %68 : vector<1x16xf32> to vector<16x16xf32>
    %70 = arith.addf %67, %69 : vector<16x16xf32>
    %cst_42 = arith.constant 0.000000e+00 : f32
    %71 = vector.broadcast %cst_42 : f32 to vector<16x16xf32>
    %72 = arith.maximumf %70, %71 : vector<16x16xf32>
    %73 = arith.truncf %72 : vector<16x16xf32> to vector<16x16xbf16>
    %c0_43 = arith.constant 0 : index
    %c0_44 = arith.constant 0 : index
    %74 = vector.load %arg14[%c0_43, %c0_44] : memref<16x8xbf16, #tpu.memory_space<vmem>>, vector<16x8xbf16>
    %cst_45 = arith.constant dense<0.000000e+00> : vector<16x8xf32>
    %75 = tpu.matmul %73, %74, %cst_45 {dimension_numbers = #tpu.dot_dimension_numbers<[1], [0], [0], [1], [0, 0, 1, 1], [], []>} : vector<16x16xbf16>, vector<16x8xbf16>, vector<16x8xf32> -> vector<16x8xf32>
    %76 = arith.truncf %75 : vector<16x8xf32> to vector<16x8xbf16>
    %cst_46 = arith.constant dense<0.000000e+00> : vector<16x8xf32>
    %77 = tpu.matmul %65, %76, %cst_46 {dimension_numbers = #tpu.dot_dimension_numbers<[1], [0], [0], [1], [0, 0, 1, 1], [], []>} : vector<16x16xbf16>, vector<16x8xbf16>, vector<16x8xf32> -> vector<16x8xf32>
    %c0_47 = arith.constant 0 : index
    %c0_48 = arith.constant 0 : index
    %78 = vector.load %arg15[%c0_47, %c0_48] : memref<1x8xf32, #tpu.memory_space<vmem>>, vector<1x8xf32>
    %79 = vector.broadcast %78 : vector<1x8xf32> to vector<16x8xf32>
    %80 = arith.addf %77, %79 : vector<16x8xf32>
    %c0_49 = arith.constant 0 : index
    %c0_50 = arith.constant 0 : index
    %81 = vector.load %arg16[%c0_49, %c0_50] : memref<16x8xf32, #tpu.memory_space<vmem>>, vector<16x8xf32>
    tpu.vector_store %arg16[%c0_49, %c0_50], %80 {strides = array<i32>} : memref<16x8xf32, #tpu.memory_space<vmem>>, vector<16x8xf32>,
    return
  }
}

</mosaic_0001>

<llo_original>
// kernel: pmesp_forward.1
$region0: #{pmesp_forward.1}
  #allocation0 [shape = 'u32[]', space=smem, size = 0x4, offset = 0x4, fixed_abs, tag = 'smem constant byte address 0x4 - core index']
  #allocation1 [shape = 'u32[144,128]{1,0:T(1,128)}', space=vmem, size = 0x12000, scoped, tag = 'internal scratch']
  %s0 = inlined_call_operand.vmem [shape: bf16[16,640], index: 0, kind: input, shape index: {}]
  %s1 = inlined_call_operand.vmem [shape: bf16[16,384], index: 1, kind: input, shape index: {}]
  %s2 = inlined_call_operand.vmem [shape: bf16[16,16], index: 2, kind: input, shape index: {}]
  %s3 = inlined_call_operand.vmem [shape: bf16[2,16,64], index: 3, kind: input, shape index: {}]
  %s4 = inlined_call_operand.vmem [shape: f32[2,16,64], index: 4, kind: input, shape index: {}]
  %s5 = inlined_call_operand.hbm [shape: bf16[640,256], index: 5, kind: input, shape index: {}]
  %s6 = inlined_call_operand.vmem [shape: bf16[64,256], index: 6, kind: input, shape index: {}]
  %s7 = inlined_call_operand.vmem [shape: f32[1,256], index: 7, kind: input, shape index: {}]
  %s8 = inlined_call_operand.vmem [shape: bf16[64,256], index: 8, kind: input, shape index: {}]
  %s9 = inlined_call_operand.vmem [shape: bf16[64,256], index: 9, kind: input, shape index: {}]
  %s10 = inlined_call_operand.vmem [shape: f32[1,256], index: 10, kind: input, shape index: {}]
  %s11 = inlined_call_operand.vmem [shape: bf16[384,16], index: 11, kind: input, shape index: {}]
  %s12 = inlined_call_operand.vmem [shape: bf16[64,16], index: 12, kind: input, shape index: {}]
  %s13 = inlined_call_operand.vmem [shape: f32[1,16], index: 13, kind: input, shape index: {}]
  %s14 = inlined_call_operand.vmem [shape: bf16[16,8], index: 14, kind: input, shape index: {}]
  %s15 = inlined_call_operand.vmem [shape: f32[1,8], index: 15, kind: input, shape index: {}]
  %s16 = inlined_call_operand.vmem [shape: f32[16,8], index: 16, kind: output, shape index: {}]
  %s17 = sld [smem:[#allocation0]]
  $region78: #{pmesp_forward.1} parent=0
    _
  %s19 = ssub.s32 1, %s17
  %s20 = scalar_select 0, %s19, %s17
  $region1: #{pmesp_forward.1} parent=0
    #allocation2 [shape = 'u8[327680]{0}', space=vmem, size = 0x50000, scoped, tag = 'input window, operand 5, single buffered']
    #allocation3 [shape = 's32[1]{0}', space=sflag, size = 0x4, scoped, tag = 'scoped memory for pmesp_forward.1']
    %21 = vsyncpa [#allocation3], 0
    // Predicated region
    $region2: #{pmesp_forward.1} parent=1 // pred_check
      _
    $region3: #{pmesp_forward.1} parent=1 // pred_check_branch
      %23 = sbr.rel (0) target = $region5
    $region4: #{pmesp_forward.1} parent=1 // pred_region
      _
    $region5: #{pmesp_forward.1} parent=1 // pred_fallthru
      _
    // Predicated region
    $region6: #{pmesp_forward.1} parent=1 // pred_check
      _
    $region7: #{pmesp_forward.1} parent=1 // pred_check_branch
      %25 = sbr.rel (0) target = $region9
    $region8: #{pmesp_forward.1} parent=1 // pred_region
      _
    $region9: #{pmesp_forward.1} parent=1 // pred_fallthru
      _
    // Predicated region
    $region10: #{pmesp_forward.1} parent=1 // pred_check
      _
    $region11: #{pmesp_forward.1} parent=1 // pred_check_branch
      %27 = sbr.rel (0) target = $region13
    $region12: #{pmesp_forward.1} parent=1 // pred_region
      _
    $region13: #{pmesp_forward.1} parent=1 // pred_fallthru
      _
    // Predicated region
    $region14: #{pmesp_forward.1} parent=1 // pred_check
      _
    $region15: #{pmesp_forward.1} parent=1 // pred_check_branch
      %29 = sbr.rel (0) target = $region17
    $region16: #{pmesp_forward.1} parent=1 // pred_region
      _
    $region17: #{pmesp_forward.1} parent=1 // pred_fallthru
      _
    // Predicated region
    $region18: #{pmesp_forward.1} parent=1 // pred_check
      _
    $region19: #{pmesp_forward.1} parent=1 // pred_check_branch
      %31 = sbr.rel (0) target = $region21
    $region20: #{pmesp_forward.1} parent=1 // pred_region
      _
    $region21: #{pmesp_forward.1} parent=1 // pred_fallthru
      _
    // Predicated region
    $region22: #{pmesp_forward.1} parent=1 // pred_check
      _
    $region23: #{pmesp_forward.1} parent=1 // pred_check_branch
      %33 = sbr.rel (0) target = $region25
    $region24: #{pmesp_forward.1} parent=1 // pred_region
      %s35 = ssub.s32 10240, 10240
      %36 = vsyncadd [#allocation3], %s35
      %s37 = sshll.u32 [#allocation2], 4
      %s38 = int_to_ptr.vmem [resolvable:$true] %s37
      %43 = dma.hbm_to_vmem [thread:$0]  %s5, 10240, %s38, [#allocation3], 128, 128, 8
    $region25: #{pmesp_forward.1} parent=1 // pred_fallthru
      _
    // Predicated region
    $region26: #{pmesp_forward.1} parent=1 // pred_check
      _
    $region27: #{pmesp_forward.1} parent=1 // pred_check_branch
      %45 = sbr.rel (0) target = $region29
    $region28: #{pmesp_forward.1} parent=1 // pred_region
      _
    $region29: #{pmesp_forward.1} parent=1 // pred_fallthru
      _
    // Predicated region
    $region30: #{pmesp_forward.1} parent=1 // pred_check
      _
    $region31: #{pmesp_forward.1} parent=1 // pred_check_branch
      %47 = sbr.rel (0) target = $region33
    $region32: #{pmesp_forward.1} parent=1 // pred_region
      _
    $region33: #{pmesp_forward.1} parent=1 // pred_fallthru
      _
    // Predicated region
    $region34: #{pmesp_forward.1} parent=1 // pred_check
      _
    $region35: #{pmesp_forward.1} parent=1 // pred_check_branch
      %49 = sbr.rel (0) target = $region37
    $region36: #{pmesp_forward.1} parent=1 // pred_region
      _
    $region37: #{pmesp_forward.1} parent=1 // pred_fallthru
      _
    // Predicated region
    $region38: #{pmesp_forward.1} parent=1 // pred_check
      _
    $region39: #{pmesp_forward.1} parent=1 // pred_check_branch
      %51 = sbr.rel (0) target = $region41
    $region40: #{pmesp_forward.1} parent=1 // pred_region
      _
    $region41: #{pmesp_forward.1} parent=1 // pred_fallthru
      _
    // Predicated region
    $region42: #{pmesp_forward.1} parent=1 // pred_check
      _
    $region43: #{pmesp_forward.1} parent=1 // pred_check_branch
      %53 = sbr.rel (0) target = $region45
    $region44: #{pmesp_forward.1} parent=1 // pred_region
      _
    $region45: #{pmesp_forward.1} parent=1 // pred_fallthru
      _
    // Predicated region
    $region46: #{pmesp_forward.1} parent=1 // pred_check
      _
    $region47: #{pmesp_forward.1} parent=1 // pred_check_branch
      %55 = sbr.rel (0) target = $region49
    $region48: #{pmesp_forward.1} parent=1 // pred_region
      _
    $region49: #{pmesp_forward.1} parent=1 // pred_fallthru
      _
    // Predicated region
    $region50: #{pmesp_forward.1} parent=1 // pred_check
      _
    $region51: #{pmesp_forward.1} parent=1 // pred_check_branch
      %57 = sbr.rel (0) target = $region53
    $region52: #{pmesp_forward.1} parent=1 // pred_region
      _
    $region53: #{pmesp_forward.1} parent=1 // pred_fallthru
      _
    // Predicated region
    $region54: #{pmesp_forward.1} parent=1 // pred_check
      _
    $region55: #{pmesp_forward.1} parent=1 // pred_check_branch
      %59 = sbr.rel (0) target = $region57
    $region56: #{pmesp_forward.1} parent=1 // pred_region
      _
    $region57: #{pmesp_forward.1} parent=1 // pred_fallthru
      _
    // Predicated region
    $region58: #{pmesp_forward.1} parent=1 // pred_check
      _
    $region59: #{pmesp_forward.1} parent=1 // pred_check_branch
      %61 = sbr.rel (0) target = $region61
    $region60: #{pmesp_forward.1} parent=1 // pred_region
      _
    $region61: #{pmesp_forward.1} parent=1 // pred_fallthru
      _
    // Predicated region
    $region62: #{pmesp_forward.1} parent=1 // pred_check
      _
    $region63: #{pmesp_forward.1} parent=1 // pred_check_branch
      %63 = sbr.rel (0) target = $region65
    $region64: #{pmesp_forward.1} parent=1 // pred_region
      _
    $region65: #{pmesp_forward.1} parent=1 // pred_fallthru
      _
    // Predicated region
    $region66: #{pmesp_forward.1} parent=1 // pred_check
      _
    $region67: #{pmesp_forward.1} parent=1 // pred_check_branch
      %65 = sbr.rel (0) target = $region69
    $region68: #{pmesp_forward.1} parent=1 // pred_region
      %66 = dma.done [#allocation3], 10240
    $region69: #{pmesp_forward.1} parent=1 // pred_fallthru
      _
    %v68 = vld [vmem:[%s0] sm:$0xff]
    %v69 = vld [vmem:[%s0 + $0x8] sm:$0xff]
    %v70 = vld [vmem:[%s0 + $0x10] sm:$0xf]
    %v71 = vld [vmem:[%s0 + $0x14] sm:$0xff]
    %v72 = vld [vmem:[%s0 + $0x1c] sm:$0xff]
    %v73 = vld [vmem:[%s0 + $0x24] sm:$0xf]
    %v74 = vld [vmem:[%s3] sm:$0xf]
    %v75 = vld [vmem:[%s3 + $0x4] sm:$0xf]
    %v76 = vld [vmem:[%s4] sm:$0xff]
    %v77 = vld [vmem:[%s4 + $0x8] sm:$0xff]
    %v78 = vld [vmem:[#allocation2] sm:$0xff]
    %v79 = vld [vmem:[#allocation2 + $0x8] sm:$0xff]
    %v80 = vld [vmem:[#allocation2 + $0x10] sm:$0xff]
    %v81 = vld [vmem:[#allocation2 + $0x18] sm:$0xff]
    %v82 = vld [vmem:[#allocation2 + $0x20] sm:$0xff]
    %v83 = vld [vmem:[#allocation2 + $0x28] sm:$0xff]
    %v84 = vld [vmem:[#allocation2 + $0x30] sm:$0xff]
    %v85 = vld [vmem:[#allocation2 + $0x38] sm:$0xff]
    %v86 = vld [vmem:[#allocation2 + $0x40] sm:$0xff]
    %v87 = vld [vmem:[#allocation2 + $0x48] sm:$0xff]
    %v88 = vld [vmem:[#allocation2 + $0x50] sm:$0xff]
    %v89 = vld [vmem:[#allocation2 + $0x58] sm:$0xff]
    %v90 = vld [vmem:[#allocation2 + $0x60] sm:$0xff]
    %v91 = vld [vmem:[#allocation2 + $0x68] sm:$0xff]
    %v92 = vld [vmem:[#allocation2 + $0x70] sm:$0xff]
    %v93 = vld [vmem:[#allocation2 + $0x78] sm:$0xff]
    %v94 = vld [vmem:[#allocation2 + $0x80] sm:$0xff]
    %v95 = vld [vmem:[#allocation2 + $0x88] sm:$0xff]
    %v96 = vld [vmem:[#allocation2 + $0x90] sm:$0xff]
    %v97 = vld [vmem:[#allocation2 + $0x98] sm:$0xff]
    %v98 = vld [vmem:[#allocation2 + $0xa0] sm:$0xff]
    %v99 = vld [vmem:[#allocation2 + $0xa8] sm:$0xff]
    %v100 = vld [vmem:[#allocation2 + $0xb0] sm:$0xff]
    %v101 = vld [vmem:[#allocation2 + $0xb8] sm:$0xff]
    %v102 = vld [vmem:[#allocation2 + $0xc0] sm:$0xff]
    %v103 = vld [vmem:[#allocation2 + $0xc8] sm:$0xff]
    %v104 = vld [vmem:[#allocation2 + $0xd0] sm:$0xff]
    %v105 = vld [vmem:[#allocation2 + $0xd8] sm:$0xff]
    %v106 = vld [vmem:[#allocation2 + $0xe0] sm:$0xff]
    %v107 = vld [vmem:[#allocation2 + $0xe8] sm:$0xff]
    %v108 = vld [vmem:[#allocation2 + $0xf0] sm:$0xff]
    %v109 = vld [vmem:[#allocation2 + $0xf8] sm:$0xff]
    %v110 = vld [vmem:[#allocation2 + $0x100] sm:$0xff]
    %v111 = vld [vmem:[#allocation2 + $0x108] sm:$0xff]
    %v112 = vld [vmem:[#allocation2 + $0x110] sm:$0xff]
    %v113 = vld [vmem:[#allocation2 + $0x118] sm:$0xff]
    %v114 = vld [vmem:[#allocation2 + $0x120] sm:$0xff]
    %v115 = vld [vmem:[#allocation2 + $0x128] sm:$0xff]
    %v116 = vld [vmem:[#allocation2 + $0x130] sm:$0xff]
    %v117 = vld [vmem:[#allocation2 + $0x138] sm:$0xff]
    %v118 = vld [vmem:[#allocation2 + $0x140] sm:$0xff]
    %v119 = vld [vmem:[#allocation2 + $0x148] sm:$0xff]
    %v120 = vld [vmem:[#allocation2 + $0x150] sm:$0xff]
    %v121 = vld [vmem:[#allocation2 + $0x158] sm:$0xff]
    %v122 = vld [vmem:[#allocation2 + $0x160] sm:$0xff]
    %v123 = vld [vmem:[#allocation2 + $0x168] sm:$0xff]
    %v124 = vld [vmem:[#allocation2 + $0x170] sm:$0xff]
    %v125 = vld [vmem:[#allocation2 + $0x178] sm:$0xff]
    %v126 = vld [vmem:[#allocation2 + $0x180] sm:$0xff]
    %v127 = vld [vmem:[#allocation2 + $0x188] sm:$0xff]
    %v128 = vld [vmem:[#allocation2 + $0x190] sm:$0xff]
    %v129 = vld [vmem:[#allocation2 + $0x198] sm:$0xff]
    %v130 = vld [vmem:[#allocation2 + $0x1a0] sm:$0xff]
    %v131 = vld [vmem:[#allocation2 + $0x1a8] sm:$0xff]
    %v132 = vld [vmem:[#allocation2 + $0x1b0] sm:$0xff]
    %v133 = vld [vmem:[#allocation2 + $0x1b8] sm:$0xff]
    %v134 = vld [vmem:[#allocation2 + $0x1c0] sm:$0xff]
    %v135 = vld [vmem:[#allocation2 + $0x1c8] sm:$0xff]
    %v136 = vld [vmem:[#allocation2 + $0x1d0] sm:$0xff]
    %v137 = vld [vmem:[#allocation2 + $0x1d8] sm:$0xff]
    %v138 = vld [vmem:[#allocation2 + $0x1e0] sm:$0xff]
    %v139 = vld [vmem:[#allocation2 + $0x1e8] sm:$0xff]
    %v140 = vld [vmem:[#allocation2 + $0x1f0] sm:$0xff]
    %v141 = vld [vmem:[#allocation2 + $0x1f8] sm:$0xff]
    %v142 = vld [vmem:[#allocation2 + $0x200] sm:$0xff]
    %v143 = vld [vmem:[#allocation2 + $0x208] sm:$0xff]
    %v144 = vld [vmem:[#allocation2 + $0x210] sm:$0xff]
    %v145 = vld [vmem:[#allocation2 + $0x218] sm:$0xff]
    %v146 = vld [vmem:[#allocation2 + $0x220] sm:$0xff]
    %v147 = vld [vmem:[#allocation2 + $0x228] sm:$0xff]
    %v148 = vld [vmem:[#allocation2 + $0x230] sm:$0xff]
    %v149 = vld [vmem:[#allocation2 + $0x238] sm:$0xff]
    %v150 = vld [vmem:[#allocation2 + $0x240] sm:$0xff]
    %v151 = vld [vmem:[#allocation2 + $0x248] sm:$0xff]
    %v152 = vld [vmem:[#allocation2 + $0x250] sm:$0xff]
    %v153 = vld [vmem:[#allocation2 + $0x258] sm:$0xff]
    %v154 = vld [vmem:[#allocation2 + $0x260] sm:$0xff]
    %v155 = vld [vmem:[#allocation2 + $0x268] sm:$0xff]
    %v156 = vld [vmem:[#allocation2 + $0x270] sm:$0xff]
    %v157 = vld [vmem:[#allocation2 + $0x278] sm:$0xff]
    %v158 = vld [vmem:[%s6] sm:$0xff]
    %v159 = vld [vmem:[%s6 + $0x8] sm:$0xff]
    %v160 = vld [vmem:[%s6 + $0x10] sm:$0xff]
    %v161 = vld [vmem:[%s6 + $0x18] sm:$0xff]
    %v162 = vld [vmem:[%s6 + $0x20] sm:$0xff]
    %v163 = vld [vmem:[%s6 + $0x28] sm:$0xff]
    %v164 = vld [vmem:[%s6 + $0x30] sm:$0xff]
    %v165 = vld [vmem:[%s6 + $0x38] sm:$0xff]
    %v166 = vld [vmem:[%s7] sm:$0x3]
    %v169 = vunpack.c.l.b16 %v74
    %v170 = vunpack.c.l.b16 %v75
    %v171 = vpack.c.b16 %v170, %v169
    %v180 = vunpack.c.l.b16 %v158
    %v181 = vunpack.c.h.b16 %v158
    %v182 = vunpack.c.l.b16 %v159
    %v183 = vunpack.c.h.b16 %v159
    %v184 = vunpack.c.l.b16 %v160
    %v185 = vunpack.c.h.b16 %v160
    %v186 = vunpack.c.l.b16 %v161
    %v187 = vunpack.c.h.b16 %v161
    %v188 = vunpack.c.l.b16 %v162
    %v189 = vunpack.c.h.b16 %v162
    %v190 = vunpack.c.l.b16 %v163
    %v191 = vunpack.c.h.b16 %v163
    %v192 = vunpack.c.l.b16 %v164
    %v193 = vunpack.c.h.b16 %v164
    %v194 = vunpack.c.l.b16 %v165
    %v195 = vunpack.c.h.b16 %v165
    %v196 = vpack.c.b16 %v182, %v180
    %v197 = vpack.c.b16 %v183, %v181
    %v198 = vpack.c.b16 %v186, %v184
    %v199 = vpack.c.b16 %v187, %v185
    %v200 = vpack.c.b16 %v190, %v188
    %v201 = vpack.c.b16 %v191, %v189
    %v202 = vpack.c.b16 %v194, %v192
    %v203 = vpack.c.b16 %v195, %v193
    %vm212 = vcmask 523264
    %v214 = vsel %vm212, %v171, 0
    %216 = vmatprep.subr.bf16.mxu0 0
    %217 = vmatpush1.bf16.msra.mxu0 0
    %218 = vmatprep.subr.bf16.mxu0 0
    %219 = vmatpush1.bf16.msra.mxu0 0
    %220 = vmatprep.subr.bf16.mxu0 0
    %221 = vmatpush1.bf16.msra.mxu0 0
    %222 = vmatprep.subr.bf16.mxu0 0
    %223 = vmatpush1.bf16.msra.mxu0 0
    %224 = vmatprep.subr.bf16.mxu0 %v203
    %225 = vmatpush1.bf16.msra.mxu0 %v202
    %226 = vmatprep.subr.bf16.mxu0 %v201
    %227 = vmatpush1.bf16.msra.mxu0 %v200
    %228 = vmatprep.subr.bf16.mxu0 %v199
    %229 = vmatpush1.bf16.msra.mxu0 %v198
    %230 = vmatprep.subr.bf16.mxu0 %v197
    %231 = vmatpush1.bf16.msra.mxu0 %v196
    %232 = vmatprep.subr.bf16.mxu0 0
    %233 = vmatpush2.bf16.msra.mxu0 0
    %234 = vmatprep.subr.bf16.mxu0 0
    %235 = vmatpush2.bf16.msra.mxu0 0
    %236 = vmatprep.subr.bf16.mxu0 0
    %237 = vmatpush2.bf16.msra.mxu0 0
    %238 = vmatprep.subr.bf16.mxu0 0
    %239 = vmatpush2.bf16.msra.mxu0 0
    %240 = vmatprep.subr.bf16.mxu0 0
    %241 = vmatpush2.bf16.msra.mxu0 0
    %242 = vmatprep.subr.bf16.mxu0 0
    %243 = vmatpush2.bf16.msra.mxu0 0
    %244 = vmatprep.subr.bf16.mxu0 0
    %245 = vmatpush2.bf16.msra.mxu0 0
    %246 = vmatprep.subr.bf16.mxu0 0
    %247 = vmatpush2.bf16.msra.mxu0 0
    %248 = vmatprep.mubr.bf16.mxu0 0
    %249 = vmatmul.mubr.bf16.gmra.mxu0 %v214
    %v250 = vpop.f32.mrf.mxu0
    %v251 = vadd.f32 0.0, %v250
    %v252 = vpop.f32.mrf.mxu0
    %v253 = vadd.f32 0.0, %v252
    %v254 = vpop.f32.mrf.mxu0
    %v255 = vadd.f32 0.0, %v254
    %v256 = vpop.f32.mrf.mxu0
    %v257 = vadd.f32 0.0, %v256
    %258 = vdwg.mxu0
    %v265 = vunpack.c.l.b16 %v68
    %v266 = vunpack.c.h.b16 %v68
    %v267 = vunpack.c.l.b16 %v69
    %v268 = vunpack.c.h.b16 %v69
    %v269 = vunpack.c.l.b16 %v70
    %v270 = vunpack.c.l.b16 %v71
    %v271 = vunpack.c.h.b16 %v71
    %v272 = vunpack.c.l.b16 %v72
    %v273 = vunpack.c.h.b16 %v72
    %v274 = vunpack.c.l.b16 %v73
    %v275 = vpack.c.b16 %v270, %v265
    %v276 = vpack.c.b16 %v271, %v266
    %v277 = vpack.c.b16 %v272, %v267
    %v278 = vpack.c.b16 %v273, %v268
    %v279 = vpack.c.b16 %v274, %v269
    %v365 = vunpack.c.l.b16 %v78
    %v366 = vunpack.c.h.b16 %v78
    %v367 = vunpack.c.l.b16 %v79
    %v368 = vunpack.c.h.b16 %v79
    %v369 = vunpack.c.l.b16 %v80
    %v370 = vunpack.c.h.b16 %v80
    %v371 = vunpack.c.l.b16 %v81
    %v372 = vunpack.c.h.b16 %v81
    %v373 = vunpack.c.l.b16 %v82
    %v374 = vunpack.c.h.b16 %v82
    %v375 = vunpack.c.l.b16 %v83
    %v376 = vunpack.c.h.b16 %v83
    %v377 = vunpack.c.l.b16 %v84
    %v378 = vunpack.c.h.b16 %v84
    %v379 = vunpack.c.l.b16 %v85
    %v380 = vunpack.c.h.b16 %v85
    %v381 = vunpack.c.l.b16 %v86
    %v382 = vunpack.c.h.b16 %v86
    %v383 = vunpack.c.l.b16 %v87
    %v384 = vunpack.c.h.b16 %v87
    %v385 = vunpack.c.l.b16 %v88
    %v386 = vunpack.c.h.b16 %v88
    %v387 = vunpack.c.l.b16 %v89
    %v388 = vunpack.c.h.b16 %v89
    %v389 = vunpack.c.l.b16 %v90
    %v390 = vunpack.c.h.b16 %v90
    %v391 = vunpack.c.l.b16 %v91
    %v392 = vunpack.c.h.b16 %v91
    %v393 = vunpack.c.l.b16 %v92
    %v394 = vunpack.c.h.b16 %v92
    %v395 = vunpack.c.l.b16 %v93
    %v396 = vunpack.c.h.b16 %v93
    %v397 = vunpack.c.l.b16 %v94
    %v398 = vunpack.c.h.b16 %v94
    %v399 = vunpack.c.l.b16 %v95
    %v400 = vunpack.c.h.b16 %v95
    %v401 = vunpack.c.l.b16 %v96
    %v402 = vunpack.c.h.b16 %v96
    %v403 = vunpack.c.l.b16 %v97
    %v404 = vunpack.c.h.b16 %v97
    %v405 = vunpack.c.l.b16 %v98
    %v406 = vunpack.c.h.b16 %v98
    %v407 = vunpack.c.l.b16 %v99
    %v408 = vunpack.c.h.b16 %v99
    %v409 = vunpack.c.l.b16 %v100
    %v410 = vunpack.c.h.b16 %v100
    %v411 = vunpack.c.l.b16 %v101
    %v412 = vunpack.c.h.b16 %v101
    %v413 = vunpack.c.l.b16 %v102
    %v414 = vunpack.c.h.b16 %v102
    %v415 = vunpack.c.l.b16 %v103
    %v416 = vunpack.c.h.b16 %v103
    %v417 = vunpack.c.l.b16 %v104
    %v418 = vunpack.c.h.b16 %v104
    %v419 = vunpack.c.l.b16 %v105
    %v420 = vunpack.c.h.b16 %v105
    %v421 = vunpack.c.l.b16 %v106
    %v422 = vunpack.c.h.b16 %v106
    %v423 = vunpack.c.l.b16 %v107
    %v424 = vunpack.c.h.b16 %v107
    %v425 = vunpack.c.l.b16 %v108
    %v426 = vunpack.c.h.b16 %v108
    %v427 = vunpack.c.l.b16 %v109
    %v428 = vunpack.c.h.b16 %v109
    %v429 = vunpack.c.l.b16 %v110
    %v430 = vunpack.c.h.b16 %v110
    %v431 = vunpack.c.l.b16 %v111
    %v432 = vunpack.c.h.b16 %v111
    %v433 = vunpack.c.l.b16 %v112
    %v434 = vunpack.c.h.b16 %v112
    %v435 = vunpack.c.l.b16 %v113
    %v436 = vunpack.c.h.b16 %v113
    %v437 = vunpack.c.l.b16 %v114
    %v438 = vunpack.c.h.b16 %v114
    %v439 = vunpack.c.l.b16 %v115
    %v440 = vunpack.c.h.b16 %v115
    %v441 = vunpack.c.l.b16 %v116
    %v442 = vunpack.c.h.b16 %v116
    %v443 = vunpack.c.l.b16 %v117
    %v444 = vunpack.c.h.b16 %v117
    %v445 = vunpack.c.l.b16 %v118
    %v446 = vunpack.c.h.b16 %v118
    %v447 = vunpack.c.l.b16 %v119
    %v448 = vunpack.c.h.b16 %v119
    %v449 = vunpack.c.l.b16 %v120
    %v450 = vunpack.c.h.b16 %v120
    %v451 = vunpack.c.l.b16 %v121
    %v452 = vunpack.c.h.b16 %v121
    %v453 = vunpack.c.l.b16 %v122
    %v454 = vunpack.c.h.b16 %v122
    %v455 = vunpack.c.l.b16 %v123
    %v456 = vunpack.c.h.b16 %v123
    %v457 = vunpack.c.l.b16 %v124
    %v458 = vunpack.c.h.b16 %v124
    %v459 = vunpack.c.l.b16 %v125
    %v460 = vunpack.c.h.b16 %v125
    %v461 = vunpack.c.l.b16 %v126
    %v462 = vunpack.c.h.b16 %v126
    %v463 = vunpack.c.l.b16 %v127
    %v464 = vunpack.c.h.b16 %v127
    %v465 = vunpack.c.l.b16 %v128
    %v466 = vunpack.c.h.b16 %v128
    %v467 = vunpack.c.l.b16 %v129
    %v468 = vunpack.c.h.b16 %v129
    %v469 = vunpack.c.l.b16 %v130
    %v470 = vunpack.c.h.b16 %v130
    %v471 = vunpack.c.l.b16 %v131
    %v472 = vunpack.c.h.b16 %v131
    %v473 = vunpack.c.l.b16 %v132
    %v474 = vunpack.c.h.b16 %v132
    %v475 = vunpack.c.l.b16 %v133
    %v476 = vunpack.c.h.b16 %v133
    %v477 = vunpack.c.l.b16 %v134
    %v478 = vunpack.c.h.b16 %v134
    %v479 = vunpack.c.l.b16 %v135
    %v480 = vunpack.c.h.b16 %v135
    %v481 = vunpack.c.l.b16 %v136
    %v482 = vunpack.c.h.b16 %v136
    %v483 = vunpack.c.l.b16 %v137
    %v484 = vunpack.c.h.b16 %v137
    %v485 = vunpack.c.l.b16 %v138
    %v486 = vunpack.c.h.b16 %v138
    %v487 = vunpack.c.l.b16 %v139
    %v488 = vunpack.c.h.b16 %v139
    %v489 = vunpack.c.l.b16 %v140
    %v490 = vunpack.c.h.b16 %v140
    %v491 = vunpack.c.l.b16 %v141
    %v492 = vunpack.c.h.b16 %v141
    %v493 = vunpack.c.l.b16 %v142
    %v494 = vunpack.c.h.b16 %v142
    %v495 = vunpack.c.l.b16 %v143
    %v496 = vunpack.c.h.b16 %v143
    %v497 = vunpack.c.l.b16 %v144
    %v498 = vunpack.c.h.b16 %v144
    %v499 = vunpack.c.l.b16 %v145
    %v500 = vunpack.c.h.b16 %v145
    %v501 = vunpack.c.l.b16 %v146
    %v502 = vunpack.c.h.b16 %v146
    %v503 = vunpack.c.l.b16 %v147
    %v504 = vunpack.c.h.b16 %v147
    %v505 = vunpack.c.l.b16 %v148
    %v506 = vunpack.c.h.b16 %v148
    %v507 = vunpack.c.l.b16 %v149
    %v508 = vunpack.c.h.b16 %v149
    %v509 = vunpack.c.l.b16 %v150
    %v510 = vunpack.c.h.b16 %v150
    %v511 = vunpack.c.l.b16 %v151
    %v512 = vunpack.c.h.b16 %v151
    %v513 = vunpack.c.l.b16 %v152
    %v514 = vunpack.c.h.b16 %v152
    %v515 = vunpack.c.l.b16 %v153
    %v516 = vunpack.c.h.b16 %v153
    %v517 = vunpack.c.l.b16 %v154
    %v518 = vunpack.c.h.b16 %v154
    %v519 = vunpack.c.l.b16 %v155
    %v520 = vunpack.c.h.b16 %v155
    %v521 = vunpack.c.l.b16 %v156
    %v522 = vunpack.c.h.b16 %v156
    %v523 = vunpack.c.l.b16 %v157
    %v524 = vunpack.c.h.b16 %v157
    %v525 = vpack.c.b16 %v367, %v365
    %v526 = vpack.c.b16 %v368, %v366
    %v527 = vpack.c.b16 %v371, %v369
    %v528 = vpack.c.b16 %v372, %v370
    %v529 = vpack.c.b16 %v375, %v373
    %v530 = vpack.c.b16 %v376, %v374
    %v531 = vpack.c.b16 %v379, %v377
    %v532 = vpack.c.b16 %v380, %v378
    %v533 = vpack.c.b16 %v383, %v381
    %v534 = vpack.c.b16 %v384, %v382
    %v535 = vpack.c.b16 %v387, %v385
    %v536 = vpack.c.b16 %v388, %v386
    %v537 = vpack.c.b16 %v391, %v389
    %v538 = vpack.c.b16 %v392, %v390
    %v539 = vpack.c.b16 %v395, %v393
    %v540 = vpack.c.b16 %v396, %v394
    %v541 = vpack.c.b16 %v399, %v397
    %v542 = vpack.c.b16 %v400, %v398
    %v543 = vpack.c.b16 %v403, %v401
    %v544 = vpack.c.b16 %v404, %v402
    %v545 = vpack.c.b16 %v407, %v405
    %v546 = vpack.c.b16 %v408, %v406
    %v547 = vpack.c.b16 %v411, %v409
    %v548 = vpack.c.b16 %v412, %v410
    %v549 = vpack.c.b16 %v415, %v413
    %v550 = vpack.c.b16 %v416, %v414
    %v551 = vpack.c.b16 %v419, %v417
    %v552 = vpack.c.b16 %v420, %v418
    %v553 = vpack.c.b16 %v423, %v421
    %v554 = vpack.c.b16 %v424, %v422
    %v555 = vpack.c.b16 %v427, %v425
    %v556 = vpack.c.b16 %v428, %v426
    %v557 = vpack.c.b16 %v431, %v429
    %v558 = vpack.c.b16 %v432, %v430
    %v559 = vpack.c.b16 %v435, %v433
    %v560 = vpack.c.b16 %v436, %v434
    %v561 = vpack.c.b16 %v439, %v437
    %v562 = vpack.c.b16 %v440, %v438
    %v563 = vpack.c.b16 %v443, %v441
    %v564 = vpack.c.b16 %v444, %v442
    %v565 = vpack.c.b16 %v447, %v445
    %v566 = vpack.c.b16 %v448, %v446
    %v567 = vpack.c.b16 %v451, %v449
    %v568 = vpack.c.b16 %v452, %v450
    %v569 = vpack.c.b16 %v455, %v453
    %v570 = vpack.c.b16 %v456, %v454
    %v571 = vpack.c.b16 %v459, %v457
    %v572 = vpack.c.b16 %v460, %v458
    %v573 = vpack.c.b16 %v463, %v461
    %v574 = vpack.c.b16 %v464, %v462
    %v575 = vpack.c.b16 %v467, %v465
    %v576 = vpack.c.b16 %v468, %v466
    %v577 = vpack.c.b16 %v471, %v469
    %v578 = vpack.c.b16 %v472, %v470
    %v579 = vpack.c.b16 %v475, %v473
    %v580 = vpack.c.b16 %v476, %v474
    %v581 = vpack.c.b16 %v479, %v477
    %v582 = vpack.c.b16 %v480, %v478
    %v583 = vpack.c.b16 %v483, %v481
    %v584 = vpack.c.b16 %v484, %v482
    %v585 = vpack.c.b16 %v487, %v485
    %v586 = vpack.c.b16 %v488, %v486
    %v587 = vpack.c.b16 %v491, %v489
    %v588 = vpack.c.b16 %v492, %v490
    %v589 = vpack.c.b16 %v495, %v493
    %v590 = vpack.c.b16 %v496, %v494
    %v591 = vpack.c.b16 %v499, %v497
    %v592 = vpack.c.b16 %v500, %v498
    %v593 = vpack.c.b16 %v503, %v501
    %v594 = vpack.c.b16 %v504, %v502
    %v595 = vpack.c.b16 %v507, %v505
    %v596 = vpack.c.b16 %v508, %v506
    %v597 = vpack.c.b16 %v511, %v509
    %v598 = vpack.c.b16 %v512, %v510
    %v599 = vpack.c.b16 %v515, %v513
    %v600 = vpack.c.b16 %v516, %v514
    %v601 = vpack.c.b16 %v519, %v517
    %v602 = vpack.c.b16 %v520, %v518
    %v603 = vpack.c.b16 %v523, %v521
    %v604 = vpack.c.b16 %v524, %v522
    %685 = vmatprep.subr.bf16.mxu0 %v540
    %686 = vmatpush1.bf16.msra.mxu0 %v539
    %687 = vmatprep.subr.bf16.mxu0 %v538
    %688 = vmatpush1.bf16.msra.mxu0 %v537
    %689 = vmatprep.subr.bf16.mxu0 %v536
    %690 = vmatpush1.bf16.msra.mxu0 %v535
    %691 = vmatprep.subr.bf16.mxu0 %v534
    %692 = vmatpush1.bf16.msra.mxu0 %v533
    %693 = vmatprep.subr.bf16.mxu0 %v532
    %694 = vmatpush1.bf16.msra.mxu0 %v531
    %695 = vmatprep.subr.bf16.mxu0 %v530
    %696 = vmatpush1.bf16.msra.mxu0 %v529
    %697 = vmatprep.subr.bf16.mxu0 %v528
    %698 = vmatpush1.bf16.msra.mxu0 %v527
    %699 = vmatprep.subr.bf16.mxu0 %v526
    %700 = vmatpush1.bf16.msra.mxu0 %v525
    %701 = vmatprep.subr.bf16.mxu0 %v556
    %702 = vmatpush2.bf16.msra.mxu0 %v555
    %703 = vmatprep.subr.bf16.mxu0 %v554
    %704 = vmatpush2.bf16.msra.mxu0 %v553
    %705 = vmatprep.subr.bf16.mxu0 %v552
    %706 = vmatpush2.bf16.msra.mxu0 %v551
    %707 = vmatprep.subr.bf16.mxu0 %v550
    %708 = vmatpush2.bf16.msra.mxu0 %v549
    %709 = vmatprep.subr.bf16.mxu0 %v548
    %710 = vmatpush2.bf16.msra.mxu0 %v547
    %711 = vmatprep.subr.bf16.mxu0 %v546
    %712 = vmatpush2.bf16.msra.mxu0 %v545
    %713 = vmatprep.subr.bf16.mxu0 %v544
    %714 = vmatpush2.bf16.msra.mxu0 %v543
    %715 = vmatprep.subr.bf16.mxu0 %v542
    %716 = vmatpush2.bf16.msra.mxu0 %v541
    %717 = vmatprep.mubr.bf16.mxu0 %v276
    %718 = vmatmul.mubr.bf16.gmra.mxu0 %v275
    %v719 = vpop.f32.mrf.mxu0
    %v720 = vadd.f32 %v251, %v719
    %v721 = vpop.f32.mrf.mxu0
    %v722 = vadd.f32 %v253, %v721
    %v723 = vpop.f32.mrf.mxu0
    %v724 = vadd.f32 %v255, %v723
    %v725 = vpop.f32.mrf.mxu0
    %v726 = vadd.f32 %v257, %v725
    %727 = vdwg.mxu0
    %728 = vmatprep.subr.bf16.mxu0 %v572
    %729 = vmatpush1.bf16.msra.mxu0 %v571
    %730 = vmatprep.subr.bf16.mxu0 %v570
    %731 = vmatpush1.bf16.msra.mxu0 %v569
    %732 = vmatprep.subr.bf16.mxu0 %v568
    %733 = vmatpush1.bf16.msra.mxu0 %v567
    %734 = vmatprep.subr.bf16.mxu0 %v566
    %735 = vmatpush1.bf16.msra.mxu0 %v565
    %736 = vmatprep.subr.bf16.mxu0 %v564
    %737 = vmatpush1.bf16.msra.mxu0 %v563
    %738 = vmatprep.subr.bf16.mxu0 %v562
    %739 = vmatpush1.bf16.msra.mxu0 %v561
    %740 = vmatprep.subr.bf16.mxu0 %v560
    %741 = vmatpush1.bf16.msra.mxu0 %v559
    %742 = vmatprep.subr.bf16.mxu0 %v558
    %743 = vmatpush1.bf16.msra.mxu0 %v557
    %744 = vmatprep.subr.bf16.mxu0 %v588
    %745 = vmatpush2.bf16.msra.mxu0 %v587
    %746 = vmatprep.subr.bf16.mxu0 %v586
    %747 = vmatpush2.bf16.msra.mxu0 %v585
    %748 = vmatprep.subr.bf16.mxu0 %v584
    %749 = vmatpush2.bf16.msra.mxu0 %v583
    %750 = vmatprep.subr.bf16.mxu0 %v582
    %751 = vmatpush2.bf16.msra.mxu0 %v581
    %752 = vmatprep.subr.bf16.mxu0 %v580
    %753 = vmatpush2.bf16.msra.mxu0 %v579
    %754 = vmatprep.subr.bf16.mxu0 %v578
    %755 = vmatpush2.bf16.msra.mxu0 %v577
    %756 = vmatprep.subr.bf16.mxu0 %v576
    %757 = vmatpush2.bf16.msra.mxu0 %v575
    %758 = vmatprep.subr.bf16.mxu0 %v574
    %759 = vmatpush2.bf16.msra.mxu0 %v573
    %760 = vmatprep.mubr.bf16.mxu0 %v278
    %761 = vmatmul.mubr.bf16.gmra.mxu0 %v277
    %v762 = vpop.f32.mrf.mxu0
    %v763 = vadd.f32 %v720, %v762
    %v764 = vpop.f32.mrf.mxu0
    %v765 = vadd.f32 %v722, %v764
    %v766 = vpop.f32.mrf.mxu0
    %v767 = vadd.f32 %v724, %v766
    %v768 = vpop.f32.mrf.mxu0
    %v769 = vadd.f32 %v726, %v768
    %770 = vdwg.mxu0
    %771 = vmatprep.subr.bf16.mxu0 %v604
    %772 = vmatpush1.bf16.msra.mxu0 %v603
    %773 = vmatprep.subr.bf16.mxu0 %v602
    %774 = vmatpush1.bf16.msra.mxu0 %v601
    %775 = vmatprep.subr.bf16.mxu0 %v600
    %776 = vmatpush1.bf16.msra.mxu0 %v599
    %777 = vmatprep.subr.bf16.mxu0 %v598
    %778 = vmatpush1.bf16.msra.mxu0 %v597
    %779 = vmatprep.subr.bf16.mxu0 %v596
    %780 = vmatpush1.bf16.msra.mxu0 %v595
    %781 = vmatprep.subr.bf16.mxu0 %v594
    %782 = vmatpush1.bf16.msra.mxu0 %v593
    %783 = vmatprep.subr.bf16.mxu0 %v592
    %784 = vmatpush1.bf16.msra.mxu0 %v591
    %785 = vmatprep.subr.bf16.mxu0 %v590
    %786 = vmatpush1.bf16.msra.mxu0 %v589
    %787 = vmatprep.subr.bf16.mxu0 0
    %788 = vmatpush2.bf16.msra.mxu0 0
    %789 = vmatprep.subr.bf16.mxu0 0
    %790 = vmatpush2.bf16.msra.mxu0 0
    %791 = vmatprep.subr.bf16.mxu0 0
    %792 = vmatpush2.bf16.msra.mxu0 0
    %793 = vmatprep.subr.bf16.mxu0 0
    %794 = vmatpush2.bf16.msra.mxu0 0
    %795 = vmatprep.subr.bf16.mxu0 0
    %796 = vmatpush2.bf16.msra.mxu0 0
    %797 = vmatprep.subr.bf16.mxu0 0
    %798 = vmatpush2.bf16.msra.mxu0 0
    %799 = vmatprep.subr.bf16.mxu0 0
    %800 = vmatpush2.bf16.msra.mxu0 0
    %801 = vmatprep.subr.bf16.mxu0 0
    %802 = vmatpush2.bf16.msra.mxu0 0
    %803 = vmatprep.mubr.bf16.mxu0 0
    %804 = vmatmul.mubr.bf16.gmra.mxu0 %v279
    %v805 = vpop.f32.mrf.mxu0
    %v806 = vadd.f32 %v763, %v805
    %v807 = vpop.f32.mrf.mxu0
    %v808 = vadd.f32 %v765, %v807
    %v809 = vpop.f32.mrf.mxu0
    %v810 = vadd.f32 %v767, %v809
    %v811 = vpop.f32.mrf.mxu0
    %v812 = vadd.f32 %v769, %v811
    %813 = vdwg.mxu0
    %v815 = vlaneseq
    %v816 = vshrl.u32 %v815, 7
    %v817 = vsub.s32 0, %v816
    %v818 = vrot.slane %v166, %v817
    %v819 = vlaneseq
    %v820 = vshrl.u32 %v819, 7
    %v821 = vsub.s32 1, %v820
    %v822 = vrot.slane %v166, %v821
    %v825 = vadd.f32 %v806, %v818
    %v826 = vadd.f32 %v808, %v822
    %v827 = vadd.f32 %v810, %v818
    %v828 = vadd.f32 %v812, %v822
    %v829 = vxor.u32 %v825, 2147483648
    %v830 = vxor.u32 %v826, 2147483648
    %v831 = vxor.u32 %v827, 2147483648
    %v832 = vxor.u32 %v828, 2147483648
    %v833 = vmul.f32 %v829, 1.442695
    %v834 = vpow.pop %v833
    %v835 = vmul.f32 %v830, 1.442695
    %v836 = vpow.pop %v835
    %v837 = vmul.f32 %v831, 1.442695
    %v838 = vpow.pop %v837
    %v839 = vmul.f32 %v832, 1.442695
    %v840 = vpow.pop %v839
    %v841 = vadd.f32 %v834, 1.0
    %v842 = vadd.f32 %v836, 1.0
    %v843 = vadd.f32 %v838, 1.0
    %v844 = vadd.f32 %v840, 1.0
    %v845 = vrcp.pop %v841
    %v846 = vmul.f32 1.0, %v845
    %v847 = vrcp.pop %v842
    %v848 = vmul.f32 1.0, %v847
    %v849 = vrcp.pop %v843
    %v850 = vmul.f32 1.0, %v849
    %v851 = vrcp.pop %v844
    %v852 = vmul.f32 1.0, %v851
    %v853 = vtanh.pop %v826
    %v854 = vtanh.pop %v828
    %857 = vrot.lane.b32.xlu0 %v76, 64
    %v858 = vpop.permute.xlu0 %857
    %859 = vrot.lane.b32.xlu0 %v77, 64
    %v860 = vpop.permute.xlu0 %859
    %v863 = vmul.f32 %v846, %v858
    %v864 = vmul.f32 %v850, %v860
    %867 = vrot.lane.b32.xlu0 %v853, 64
    %v868 = vpop.permute.xlu0 %867
    %869 = vrot.lane.b32.xlu0 %v854, 64
    %v870 = vpop.permute.xlu0 %869
    %v873 = vmul.f32 %v846, %v868
    %v874 = vmul.f32 %v850, %v870
    %877 = vrot.lane.b32.xlu0 %v873, 64
    %v878 = vpop.permute.xlu0 %877
    %879 = vrot.lane.b32.xlu0 %v874, 64
    %v880 = vpop.permute.xlu0 %879
    %v883 = vadd.f32 %v863, %v878
    %v884 = vadd.f32 %v864, %v880
    %v885 = vtanh.pop %v883
    %v886 = vtanh.pop %v884
    %889 = vrot.lane.b32.xlu0 %v885, 64
    %v890 = vpop.permute.xlu0 %889
    %891 = vrot.lane.b32.xlu0 %v886, 64
    %v892 = vpop.permute.xlu0 %891
    %v895 = vmul.f32 %v848, %v890
    %v896 = vmul.f32 %v852, %v892
    %v897 = vpack.c.bf16 %v896, %v895
    %s898 = scalar_lea.vmem %s3, 8
    %v899 = vld [vmem:[%s898] sm:$0xf]
    %v900 = vld [vmem:[%s898 + $0x4] sm:$0xf]
    %s901 = scalar_lea.vmem %s4, 16
    %v902 = vld [vmem:[%s901] sm:$0xff]
    %v903 = vld [vmem:[%s901 + $0x8] sm:$0xff]
    %v904 = vld [vmem:[%s8] sm:$0xff]
    %v905 = vld [vmem:[%s8 + $0x8] sm:$0xff]
    %v906 = vld [vmem:[%s8 + $0x10] sm:$0xff]
    %v907 = vld [vmem:[%s8 + $0x18] sm:$0xff]
    %v908 = vld [vmem:[%s8 + $0x20] sm:$0xff]
    %v909 = vld [vmem:[%s8 + $0x28] sm:$0xff]
    %v910 = vld [vmem:[%s8 + $0x30] sm:$0xff]
    %v911 = vld [vmem:[%s8 + $0x38] sm:$0xff]
    %v912 = vld [vmem:[%s9] sm:$0xff]
    %v913 = vld [vmem:[%s9 + $0x8] sm:$0xff]
    %v914 = vld [vmem:[%s9 + $0x10] sm:$0xff]
    %v915 = vld [vmem:[%s9 + $0x18] sm:$0xff]
    %v916 = vld [vmem:[%s9 + $0x20] sm:$0xff]
    %v917 = vld [vmem:[%s9 + $0x28] sm:$0xff]
    %v918 = vld [vmem:[%s9 + $0x30] sm:$0xff]
    %v919 = vld [vmem:[%s9 + $0x38] sm:$0xff]
    %v920 = vld [vmem:[%s10] sm:$0x3]
    %v923 = vunpack.c.l.b16 %v899
    %v924 = vunpack.c.l.b16 %v900
    %v925 = vpack.c.b16 %v924, %v923
    %v934 = vunpack.c.l.b16 %v912
    %v935 = vunpack.c.h.b16 %v912
    %v936 = vunpack.c.l.b16 %v913
    %v937 = vunpack.c.h.b16 %v913
    %v938 = vunpack.c.l.b16 %v914
    %v939 = vunpack.c.h.b16 %v914
    %v940 = vunpack.c.l.b16 %v915
    %v941 = vunpack.c.h.b16 %v915
    %v942 = vunpack.c.l.b16 %v916
    %v943 = vunpack.c.h.b16 %v916
    %v944 = vunpack.c.l.b16 %v917
    %v945 = vunpack.c.h.b16 %v917
    %v946 = vunpack.c.l.b16 %v918
    %v947 = vunpack.c.h.b16 %v918
    %v948 = vunpack.c.l.b16 %v919
    %v949 = vunpack.c.h.b16 %v919
    %v950 = vpack.c.b16 %v936, %v934
    %v951 = vpack.c.b16 %v937, %v935
    %v952 = vpack.c.b16 %v940, %v938
    %v953 = vpack.c.b16 %v941, %v939
    %v954 = vpack.c.b16 %v944, %v942
    %v955 = vpack.c.b16 %v945, %v943
    %v956 = vpack.c.b16 %v948, %v946
    %v957 = vpack.c.b16 %v949, %v947
    %v967 = vsel %vm212, %v925, 0
    %969 = vmatprep.subr.bf16.mxu0 0
    %970 = vmatpush1.bf16.msra.mxu0 0
    %971 = vmatprep.subr.bf16.mxu0 0
    %972 = vmatpush1.bf16.msra.mxu0 0
    %973 = vmatprep.subr.bf16.mxu0 0
    %974 = vmatpush1.bf16.msra.mxu0 0
    %975 = vmatprep.subr.bf16.mxu0 0
    %976 = vmatpush1.bf16.msra.mxu0 0
    %977 = vmatprep.subr.bf16.mxu0 %v957
    %978 = vmatpush1.bf16.msra.mxu0 %v956
    %979 = vmatprep.subr.bf16.mxu0 %v955
    %980 = vmatpush1.bf16.msra.mxu0 %v954
    %981 = vmatprep.subr.bf16.mxu0 %v953
    %982 = vmatpush1.bf16.msra.mxu0 %v952
    %983 = vmatprep.subr.bf16.mxu0 %v951
    %984 = vmatpush1.bf16.msra.mxu0 %v950
    %985 = vmatprep.subr.bf16.mxu0 0
    %986 = vmatpush2.bf16.msra.mxu0 0
    %987 = vmatprep.subr.bf16.mxu0 0
    %988 = vmatpush2.bf16.msra.mxu0 0
    %989 = vmatprep.subr.bf16.mxu0 0
    %990 = vmatpush2.bf16.msra.mxu0 0
    %991 = vmatprep.subr.bf16.mxu0 0
    %992 = vmatpush2.bf16.msra.mxu0 0
    %993 = vmatprep.subr.bf16.mxu0 0
    %994 = vmatpush2.bf16.msra.mxu0 0
    %995 = vmatprep.subr.bf16.mxu0 0
    %996 = vmatpush2.bf16.msra.mxu0 0
    %997 = vmatprep.subr.bf16.mxu0 0
    %998 = vmatpush2.bf16.msra.mxu0 0
    %999 = vmatprep.subr.bf16.mxu0 0
    %1000 = vmatpush2.bf16.msra.mxu0 0
    %1001 = vmatprep.mubr.bf16.mxu0 0
    %1002 = vmatmul.mubr.bf16.gmra.mxu0 %v967
    %v1003 = vpop.f32.mrf.mxu0
    %v1004 = vadd.f32 0.0, %v1003
    %v1005 = vpop.f32.mrf.mxu0
    %v1006 = vadd.f32 0.0, %v1005
    %v1007 = vpop.f32.mrf.mxu0
    %v1008 = vadd.f32 0.0, %v1007
    %v1009 = vpop.f32.mrf.mxu0
    %v1010 = vadd.f32 0.0, %v1009
    %1011 = vdwg.mxu0
    %v1020 = vunpack.c.l.b16 %v904
    %v1021 = vunpack.c.h.b16 %v904
    %v1022 = vunpack.c.l.b16 %v905
    %v1023 = vunpack.c.h.b16 %v905
    %v1024 = vunpack.c.l.b16 %v906
    %v1025 = vunpack.c.h.b16 %v906
    %v1026 = vunpack.c.l.b16 %v907
    %v1027 = vunpack.c.h.b16 %v907
    %v1028 = vunpack.c.l.b16 %v908
    %v1029 = vunpack.c.h.b16 %v908
    %v1030 = vunpack.c.l.b16 %v909
    %v1031 = vunpack.c.h.b16 %v909
    %v1032 = vunpack.c.l.b16 %v910
    %v1033 = vunpack.c.h.b16 %v910
    %v1034 = vunpack.c.l.b16 %v911
    %v1035 = vunpack.c.h.b16 %v911
    %v1036 = vpack.c.b16 %v1022, %v1020
    %v1037 = vpack.c.b16 %v1023, %v1021
    %v1038 = vpack.c.b16 %v1026, %v1024
    %v1039 = vpack.c.b16 %v1027, %v1025
    %v1040 = vpack.c.b16 %v1030, %v1028
    %v1041 = vpack.c.b16 %v1031, %v1029
    %v1042 = vpack.c.b16 %v1034, %v1032
    %v1043 = vpack.c.b16 %v1035, %v1033
    %v1053 = vsel %vm212, %v897, 0
    %1055 = vmatprep.subr.bf16.mxu0 0
    %1056 = vmatpush1.bf16.msra.mxu0 0
    %1057 = vmatprep.subr.bf16.mxu0 0
    %1058 = vmatpush1.bf16.msra.mxu0 0
    %1059 = vmatprep.subr.bf16.mxu0 0
    %1060 = vmatpush1.bf16.msra.mxu0 0
    %1061 = vmatprep.subr.bf16.mxu0 0
    %1062 = vmatpush1.bf16.msra.mxu0 0
    %1063 = vmatprep.subr.bf16.mxu0 %v1043
    %1064 = vmatpush1.bf16.msra.mxu0 %v1042
    %1065 = vmatprep.subr.bf16.mxu0 %v1041
    %1066 = vmatpush1.bf16.msra.mxu0 %v1040
    %1067 = vmatprep.subr.bf16.mxu0 %v1039
    %1068 = vmatpush1.bf16.msra.mxu0 %v1038
    %1069 = vmatprep.subr.bf16.mxu0 %v1037
    %1070 = vmatpush1.bf16.msra.mxu0 %v1036
    %1071 = vmatprep.subr.bf16.mxu0 0
    %1072 = vmatpush2.bf16.msra.mxu0 0
    %1073 = vmatprep.subr.bf16.mxu0 0
    %1074 = vmatpush2.bf16.msra.mxu0 0
    %1075 = vmatprep.subr.bf16.mxu0 0
    %1076 = vmatpush2.bf16.msra.mxu0 0
    %1077 = vmatprep.subr.bf16.mxu0 0
    %1078 = vmatpush2.bf16.msra.mxu0 0
    %1079 = vmatprep.subr.bf16.mxu0 0
    %1080 = vmatpush2.bf16.msra.mxu0 0
    %1081 = vmatprep.subr.bf16.mxu0 0
    %1082 = vmatpush2.bf16.msra.mxu0 0
    %1083 = vmatprep.subr.bf16.mxu0 0
    %1084 = vmatpush2.bf16.msra.mxu0 0
    %1085 = vmatprep.subr.bf16.mxu0 0
    %1086 = vmatpush2.bf16.msra.mxu0 0
    %1087 = vmatprep.mubr.bf16.mxu0 0
    %1088 = vmatmul.mubr.bf16.gmra.mxu0 %v1053
    %v1089 = vpop.f32.mrf.mxu0
    %v1090 = vadd.f32 %v1004, %v1089
    %v1091 = vpop.f32.mrf.mxu0
    %v1092 = vadd.f32 %v1006, %v1091
    %v1093 = vpop.f32.mrf.mxu0
    %v1094 = vadd.f32 %v1008, %v1093
    %v1095 = vpop.f32.mrf.mxu0
    %v1096 = vadd.f32 %v1010, %v1095
    %1097 = vdwg.mxu0
    %v1099 = vlaneseq
    %v1100 = vshrl.u32 %v1099, 7
    %v1101 = vsub.s32 0, %v1100
    %v1102 = vrot.slane %v920, %v1101
    %v1103 = vlaneseq
    %v1104 = vshrl.u32 %v1103, 7
    %v1105 = vsub.s32 1, %v1104
    %v1106 = vrot.slane %v920, %v1105
    %v1109 = vadd.f32 %v1090, %v1102
    %v1110 = vadd.f32 %v1092, %v1106
    %v1111 = vadd.f32 %v1094, %v1102
    %v1112 = vadd.f32 %v1096, %v1106
    %v1113 = vxor.u32 %v1109, 2147483648
    %v1114 = vxor.u32 %v1110, 2147483648
    %v1115 = vxor.u32 %v1111, 2147483648
    %v1116 = vxor.u32 %v1112, 2147483648
    %v1117 = vmul.f32 %v1113, 1.442695
    %v1118 = vpow.pop %v1117
    %v1119 = vmul.f32 %v1114, 1.442695
    %v1120 = vpow.pop %v1119
    %v1121 = vmul.f32 %v1115, 1.442695
    %v1122 = vpow.pop %v1121
    %v1123 = vmul.f32 %v1116, 1.442695
    %v1124 = vpow.pop %v1123
    %v1125 = vadd.f32 %v1118, 1.0
    %v1126 = vadd.f32 %v1120, 1.0
    %v1127 = vadd.f32 %v1122, 1.0
    %v1128 = vadd.f32 %v1124, 1.0
    %v1129 = vrcp.pop %v1125
    %v1130 = vmul.f32 1.0, %v1129
    %v1131 = vrcp.pop %v1126
    %v1132 = vmul.f32 1.0, %v1131
    %v1133 = vrcp.pop %v1127
    %v1134 = vmul.f32 1.0, %v1133
    %v1135 = vrcp.pop %v1128
    %v1136 = vmul.f32 1.0, %v1135
    %v1137 = vtanh.pop %v1110
    %v1138 = vtanh.pop %v1112
    %1141 = vrot.lane.b32.xlu0 %v902, 64
    %v1142 = vpop.permute.xlu0 %1141
    %1143 = vrot.lane.b32.xlu0 %v903, 64
    %v1144 = vpop.permute.xlu0 %1143
    %v1147 = vmul.f32 %v1130, %v1142
    %v1148 = vmul.f32 %v1134, %v1144
    %1151 = vrot.lane.b32.xlu0 %v1137, 64
    %v1152 = vpop.permute.xlu0 %1151
    %1153 = vrot.lane.b32.xlu0 %v1138, 64
    %v1154 = vpop.permute.xlu0 %1153
    %v1157 = vmul.f32 %v1130, %v1152
    %v1158 = vmul.f32 %v1134, %v1154
    %1161 = vrot.lane.b32.xlu0 %v1157, 64
    %v1162 = vpop.permute.xlu0 %1161
    %1163 = vrot.lane.b32.xlu0 %v1158, 64
    %v1164 = vpop.permute.xlu0 %1163
    %v1167 = vadd.f32 %v1147, %v1162
    %v1168 = vadd.f32 %v1148, %v1164
    %v1169 = vtanh.pop %v1167
    %v1170 = vtanh.pop %v1168
    %1173 = vrot.lane.b32.xlu0 %v1169, 64
    %v1174 = vpop.permute.xlu0 %1173
    %1175 = vrot.lane.b32.xlu0 %v1170, 64
    %v1176 = vpop.permute.xlu0 %1175
    %v1179 = vmul.f32 %v1132, %v1174
    %v1180 = vmul.f32 %v1136, %v1176
    %v1181 = vld [vmem:[%s1] sm:$0xff]
    %v1182 = vld [vmem:[%s1 + $0x8] sm:$0xf]
    %v1183 = vld [vmem:[%s1 + $0xc] sm:$0xff]
    %v1184 = vld [vmem:[%s1 + $0x14] sm:$0xf]
    %v1185 = vld [vmem:[%s11] sm:$0xf]
    %v1186 = vld [vmem:[%s11 + $0x4] sm:$0xf]
    %v1187 = vld [vmem:[%s11 + $0x8] sm:$0xf]
    %v1188 = vld [vmem:[%s11 + $0xc] sm:$0xf]
    %v1189 = vld [vmem:[%s11 + $0x10] sm:$0xf]
    %v1190 = vld [vmem:[%s11 + $0x14] sm:$0xf]
    %v1191 = vld [vmem:[%s11 + $0x18] sm:$0xf]
    %v1192 = vld [vmem:[%s11 + $0x1c] sm:$0xf]
    %v1193 = vld [vmem:[%s11 + $0x20] sm:$0xf]
    %v1194 = vld [vmem:[%s11 + $0x24] sm:$0xf]
    %v1195 = vld [vmem:[%s11 + $0x28] sm:$0xf]
    %v1196 = vld [vmem:[%s11 + $0x2c] sm:$0xf]
    %v1197 = vld [vmem:[%s11 + $0x30] sm:$0xf]
    %v1198 = vld [vmem:[%s11 + $0x34] sm:$0xf]
    %v1199 = vld [vmem:[%s11 + $0x38] sm:$0xf]
    %v1200 = vld [vmem:[%s11 + $0x3c] sm:$0xf]
    %v1201 = vld [vmem:[%s11 + $0x40] sm:$0xf]
    %v1202 = vld [vmem:[%s11 + $0x44] sm:$0xf]
    %v1203 = vld [vmem:[%s11 + $0x48] sm:$0xf]
    %v1204 = vld [vmem:[%s11 + $0x4c] sm:$0xf]
    %v1205 = vld [vmem:[%s11 + $0x50] sm:$0xf]
    %v1206 = vld [vmem:[%s11 + $0x54] sm:$0xf]
    %v1207 = vld [vmem:[%s11 + $0x58] sm:$0xf]
    %v1208 = vld [vmem:[%s11 + $0x5c] sm:$0xf]
    %v1209 = vld [vmem:[%s11 + $0x60] sm:$0xf]
    %v1210 = vld [vmem:[%s11 + $0x64] sm:$0xf]
    %v1211 = vld [vmem:[%s11 + $0x68] sm:$0xf]
    %v1212 = vld [vmem:[%s11 + $0x6c] sm:$0xf]
    %v1213 = vld [vmem:[%s11 + $0x70] sm:$0xf]
    %v1214 = vld [vmem:[%s11 + $0x74] sm:$0xf]
    %v1215 = vld [vmem:[%s11 + $0x78] sm:$0xf]
    %v1216 = vld [vmem:[%s11 + $0x7c] sm:$0xf]
    %v1217 = vld [vmem:[%s11 + $0x80] sm:$0xf]
    %v1218 = vld [vmem:[%s11 + $0x84] sm:$0xf]
    %v1219 = vld [vmem:[%s11 + $0x88] sm:$0xf]
    %v1220 = vld [vmem:[%s11 + $0x8c] sm:$0xf]
    %v1221 = vld [vmem:[%s11 + $0x90] sm:$0xf]
    %v1222 = vld [vmem:[%s11 + $0x94] sm:$0xf]
    %v1223 = vld [vmem:[%s11 + $0x98] sm:$0xf]
    %v1224 = vld [vmem:[%s11 + $0x9c] sm:$0xf]
    %v1225 = vld [vmem:[%s11 + $0xa0] sm:$0xf]
    %v1226 = vld [vmem:[%s11 + $0xa4] sm:$0xf]
    %v1227 = vld [vmem:[%s11 + $0xa8] sm:$0xf]
    %v1228 = vld [vmem:[%s11 + $0xac] sm:$0xf]
    %v1229 = vld [vmem:[%s11 + $0xb0] sm:$0xf]
    %v1230 = vld [vmem:[%s11 + $0xb4] sm:$0xf]
    %v1231 = vld [vmem:[%s11 + $0xb8] sm:$0xf]
    %v1232 = vld [vmem:[%s11 + $0xbc] sm:$0xf]
    %v1233 = vpack.c.bf16 %v1180, %v1179
    %v1234 = vld [vmem:[%s12] sm:$0xf]
    %v1235 = vld [vmem:[%s12 + $0x4] sm:$0xf]
    %v1236 = vld [vmem:[%s12 + $0x8] sm:$0xf]
    %v1237 = vld [vmem:[%s12 + $0xc] sm:$0xf]
    %v1238 = vld [vmem:[%s12 + $0x10] sm:$0xf]
    %v1239 = vld [vmem:[%s12 + $0x14] sm:$0xf]
    %v1240 = vld [vmem:[%s12 + $0x18] sm:$0xf]
    %v1241 = vld [vmem:[%s12 + $0x1c] sm:$0xf]
    %v1250 = vunpack.c.l.b16 %v1234
    %v1251 = vunpack.c.l.b16 %v1235
    %v1252 = vunpack.c.l.b16 %v1236
    %v1253 = vunpack.c.l.b16 %v1237
    %v1254 = vunpack.c.l.b16 %v1238
    %v1255 = vunpack.c.l.b16 %v1239
    %v1256 = vunpack.c.l.b16 %v1240
    %v1257 = vunpack.c.l.b16 %v1241
    %v1258 = vpack.c.b16 %v1251, %v1250
    %v1259 = vpack.c.b16 %v1253, %v1252
    %v1260 = vpack.c.b16 %v1255, %v1254
    %v1261 = vpack.c.b16 %v1257, %v1256
    %v1267 = vsel %vm212, %v1233, 0
    %1269 = vmatprep.subr.bf16.mxu0 0
    %1270 = vmatpush1.bf16.msra.mxu0 0
    %1271 = vmatprep.subr.bf16.mxu0 0
    %1272 = vmatpush1.bf16.msra.mxu0 0
    %1273 = vmatprep.subr.bf16.mxu0 0
    %1274 = vmatpush1.bf16.msra.mxu0 0
    %1275 = vmatprep.subr.bf16.mxu0 0
    %1276 = vmatpush1.bf16.msra.mxu0 0
    %1277 = vmatprep.subr.bf16.mxu0 0
    %1278 = vmatpush1.bf16.msra.mxu0 %v1261
    %1279 = vmatprep.subr.bf16.mxu0 0
    %1280 = vmatpush1.bf16.msra.mxu0 %v1260
    %1281 = vmatprep.subr.bf16.mxu0 0
    %1282 = vmatpush1.bf16.msra.mxu0 %v1259
    %1283 = vmatprep.subr.bf16.mxu0 0
    %1284 = vmatpush1.bf16.msra.mxu0 %v1258
    %1285 = vmatprep.subr.bf16.mxu0 0
    %1286 = vmatpush2.bf16.msra.mxu0 0
    %1287 = vmatprep.subr.bf16.mxu0 0
    %1288 = vmatpush2.bf16.msra.mxu0 0
    %1289 = vmatprep.subr.bf16.mxu0 0
    %1290 = vmatpush2.bf16.msra.mxu0 0
    %1291 = vmatprep.subr.bf16.mxu0 0
    %1292 = vmatpush2.bf16.msra.mxu0 0
    %1293 = vmatprep.subr.bf16.mxu0 0
    %1294 = vmatpush2.bf16.msra.mxu0 0
    %1295 = vmatprep.subr.bf16.mxu0 0
    %1296 = vmatpush2.bf16.msra.mxu0 0
    %1297 = vmatprep.subr.bf16.mxu0 0
    %1298 = vmatpush2.bf16.msra.mxu0 0
    %1299 = vmatprep.subr.bf16.mxu0 0
    %1300 = vmatpush2.bf16.msra.mxu0 0
    %1301 = vmatprep.mubr.bf16.mxu0 0
    %1302 = vmatmul.mubr.bf16.gmra.mxu0 %v1267
    %v1303 = vpop.f32.mrf.mxu0
    %v1304 = vadd.f32 0.0, %v1303
    %v1305 = vpop.f32.mrf.mxu0
    %v1306 = vpop.f32.mrf.mxu0
    %v1307 = vadd.f32 0.0, %v1306
    %v1308 = vpop.f32.mrf.mxu0
    %1309 = vdwg.mxu0
    %v1314 = vunpack.c.l.b16 %v1181
    %v1315 = vunpack.c.h.b16 %v1181
    %v1316 = vunpack.c.l.b16 %v1182
    %v1317 = vunpack.c.l.b16 %v1183
    %v1318 = vunpack.c.h.b16 %v1183
    %v1319 = vunpack.c.l.b16 %v1184
    %v1320 = vpack.c.b16 %v1317, %v1314
    %v1321 = vpack.c.b16 %v1318, %v1315
    %v1322 = vpack.c.b16 %v1319, %v1316
    %v1374 = vunpack.c.l.b16 %v1185
    %v1375 = vunpack.c.l.b16 %v1186
    %v1376 = vunpack.c.l.b16 %v1187
    %v1377 = vunpack.c.l.b16 %v1188
    %v1378 = vunpack.c.l.b16 %v1189
    %v1379 = vunpack.c.l.b16 %v1190
    %v1380 = vunpack.c.l.b16 %v1191
    %v1381 = vunpack.c.l.b16 %v1192
    %v1382 = vunpack.c.l.b16 %v1193
    %v1383 = vunpack.c.l.b16 %v1194
    %v1384 = vunpack.c.l.b16 %v1195
    %v1385 = vunpack.c.l.b16 %v1196
    %v1386 = vunpack.c.l.b16 %v1197
    %v1387 = vunpack.c.l.b16 %v1198
    %v1388 = vunpack.c.l.b16 %v1199
    %v1389 = vunpack.c.l.b16 %v1200
    %v1390 = vunpack.c.l.b16 %v1201
    %v1391 = vunpack.c.l.b16 %v1202
    %v1392 = vunpack.c.l.b16 %v1203
    %v1393 = vunpack.c.l.b16 %v1204
    %v1394 = vunpack.c.l.b16 %v1205
    %v1395 = vunpack.c.l.b16 %v1206
    %v1396 = vunpack.c.l.b16 %v1207
    %v1397 = vunpack.c.l.b16 %v1208
    %v1398 = vunpack.c.l.b16 %v1209
    %v1399 = vunpack.c.l.b16 %v1210
    %v1400 = vunpack.c.l.b16 %v1211
    %v1401 = vunpack.c.l.b16 %v1212
    %v1402 = vunpack.c.l.b16 %v1213
    %v1403 = vunpack.c.l.b16 %v1214
    %v1404 = vunpack.c.l.b16 %v1215
    %v1405 = vunpack.c.l.b16 %v1216
    %v1406 = vunpack.c.l.b16 %v1217
    %v1407 = vunpack.c.l.b16 %v1218
    %v1408 = vunpack.c.l.b16 %v1219
    %v1409 = vunpack.c.l.b16 %v1220
    %v1410 = vunpack.c.l.b16 %v1221
    %v1411 = vunpack.c.l.b16 %v1222
    %v1412 = vunpack.c.l.b16 %v1223
    %v1413 = vunpack.c.l.b16 %v1224
    %v1414 = vunpack.c.l.b16 %v1225
    %v1415 = vunpack.c.l.b16 %v1226
    %v1416 = vunpack.c.l.b16 %v1227
    %v1417 = vunpack.c.l.b16 %v1228
    %v1418 = vunpack.c.l.b16 %v1229
    %v1419 = vunpack.c.l.b16 %v1230
    %v1420 = vunpack.c.l.b16 %v1231
    %v1421 = vunpack.c.l.b16 %v1232
    %v1422 = vpack.c.b16 %v1375, %v1374
    %v1423 = vpack.c.b16 %v1377, %v1376
    %v1424 = vpack.c.b16 %v1379, %v1378
    %v1425 = vpack.c.b16 %v1381, %v1380
    %v1426 = vpack.c.b16 %v1383, %v1382
    %v1427 = vpack.c.b16 %v1385, %v1384
    %v1428 = vpack.c.b16 %v1387, %v1386
    %v1429 = vpack.c.b16 %v1389, %v1388
    %v1430 = vpack.c.b16 %v1391, %v1390
    %v1431 = vpack.c.b16 %v1393, %v1392
    %v1432 = vpack.c.b16 %v1395, %v1394
    %v1433 = vpack.c.b16 %v1397, %v1396
    %v1434 = vpack.c.b16 %v1399, %v1398
    %v1435 = vpack.c.b16 %v1401, %v1400
    %v1436 = vpack.c.b16 %v1403, %v1402
    %v1437 = vpack.c.b16 %v1405, %v1404
    %v1438 = vpack.c.b16 %v1407, %v1406
    %v1439 = vpack.c.b16 %v1409, %v1408
    %v1440 = vpack.c.b16 %v1411, %v1410
    %v1441 = vpack.c.b16 %v1413, %v1412
    %v1442 = vpack.c.b16 %v1415, %v1414
    %v1443 = vpack.c.b16 %v1417, %v1416
    %v1444 = vpack.c.b16 %v1419, %v1418
    %v1445 = vpack.c.b16 %v1421, %v1420
    %1470 = vmatprep.subr.bf16.mxu0 0
    %1471 = vmatpush1.bf16.msra.mxu0 %v1429
    %1472 = vmatprep.subr.bf16.mxu0 0
    %1473 = vmatpush1.bf16.msra.mxu0 %v1428
    %1474 = vmatprep.subr.bf16.mxu0 0
    %1475 = vmatpush1.bf16.msra.mxu0 %v1427
    %1476 = vmatprep.subr.bf16.mxu0 0
    %1477 = vmatpush1.bf16.msra.mxu0 %v1426
    %1478 = vmatprep.subr.bf16.mxu0 0
    %1479 = vmatpush1.bf16.msra.mxu0 %v1425
    %1480 = vmatprep.subr.bf16.mxu0 0
    %1481 = vmatpush1.bf16.msra.mxu0 %v1424
    %1482 = vmatprep.subr.bf16.mxu0 0
    %1483 = vmatpush1.bf16.msra.mxu0 %v1423
    %1484 = vmatprep.subr.bf16.mxu0 0
    %1485 = vmatpush1.bf16.msra.mxu0 %v1422
    %1486 = vmatprep.subr.bf16.mxu0 0
    %1487 = vmatpush2.bf16.msra.mxu0 %v1437
    %1488 = vmatprep.subr.bf16.mxu0 0
    %1489 = vmatpush2.bf16.msra.mxu0 %v1436
    %1490 = vmatprep.subr.bf16.mxu0 0
    %1491 = vmatpush2.bf16.msra.mxu0 %v1435
    %1492 = vmatprep.subr.bf16.mxu0 0
    %1493 = vmatpush2.bf16.msra.mxu0 %v1434
    %1494 = vmatprep.subr.bf16.mxu0 0
    %1495 = vmatpush2.bf16.msra.mxu0 %v1433
    %1496 = vmatprep.subr.bf16.mxu0 0
    %1497 = vmatpush2.bf16.msra.mxu0 %v1432
    %1498 = vmatprep.subr.bf16.mxu0 0
    %1499 = vmatpush2.bf16.msra.mxu0 %v1431
    %1500 = vmatprep.subr.bf16.mxu0 0
    %1501 = vmatpush2.bf16.msra.mxu0 %v1430
    %1502 = vmatprep.mubr.bf16.mxu0 %v1321
    %1503 = vmatmul.mubr.bf16.gmra.mxu0 %v1320
    %v1504 = vpop.f32.mrf.mxu0
    %v1505 = vadd.f32 %v1304, %v1504
    %v1506 = vpop.f32.mrf.mxu0
    %v1507 = vpop.f32.mrf.mxu0
    %v1508 = vadd.f32 %v1307, %v1507
    %v1509 = vpop.f32.mrf.mxu0
    %1510 = vdwg.mxu0
    %1511 = vmatprep.subr.bf16.mxu0 0
    %1512 = vmatpush1.bf16.msra.mxu0 %v1445
    %1513 = vmatprep.subr.bf16.mxu0 0
    %1514 = vmatpush1.bf16.msra.mxu0 %v1444
    %1515 = vmatprep.subr.bf16.mxu0 0
    %1516 = vmatpush1.bf16.msra.mxu0 %v1443
    %1517 = vmatprep.subr.bf16.mxu0 0
    %1518 = vmatpush1.bf16.msra.mxu0 %v1442
    %1519 = vmatprep.subr.bf16.mxu0 0
    %1520 = vmatpush1.bf16.msra.mxu0 %v1441
    %1521 = vmatprep.subr.bf16.mxu0 0
    %1522 = vmatpush1.bf16.msra.mxu0 %v1440
    %1523 = vmatprep.subr.bf16.mxu0 0
    %1524 = vmatpush1.bf16.msra.mxu0 %v1439
    %1525 = vmatprep.subr.bf16.mxu0 0
    %1526 = vmatpush1.bf16.msra.mxu0 %v1438
    %1527 = vmatprep.subr.bf16.mxu0 0
    %1528 = vmatpush2.bf16.msra.mxu0 0
    %1529 = vmatprep.subr.bf16.mxu0 0
    %1530 = vmatpush2.bf16.msra.mxu0 0
    %1531 = vmatprep.subr.bf16.mxu0 0
    %1532 = vmatpush2.bf16.msra.mxu0 0
    %1533 = vmatprep.subr.bf16.mxu0 0
    %1534 = vmatpush2.bf16.msra.mxu0 0
    %1535 = vmatprep.subr.bf16.mxu0 0
    %1536 = vmatpush2.bf16.msra.mxu0 0
    %1537 = vmatprep.subr.bf16.mxu0 0
    %1538 = vmatpush2.bf16.msra.mxu0 0
    %1539 = vmatprep.subr.bf16.mxu0 0
    %1540 = vmatpush2.bf16.msra.mxu0 0
    %1541 = vmatprep.subr.bf16.mxu0 0
    %1542 = vmatpush2.bf16.msra.mxu0 0
    %1543 = vmatprep.mubr.bf16.mxu0 0
    %1544 = vmatmul.mubr.bf16.gmra.mxu0 %v1322
    %v1545 = vpop.f32.mrf.mxu0
    %v1546 = vadd.f32 %v1505, %v1545
    %v1547 = vpop.f32.mrf.mxu0
    %v1548 = vpop.f32.mrf.mxu0
    %v1549 = vadd.f32 %v1508, %v1548
    %v1550 = vpop.f32.mrf.mxu0
    %1551 = vdwg.mxu0
    %v1552 = vld [vmem:[%s2] sm:$0xf]
    %v1553 = vld [vmem:[%s2 + $0x4] sm:$0xf]
    %v1554 = vpack.c.bf16 %v1549, %v1546
    %v1555 = vld [vmem:[%s13] sm:$0x1]
    %v1557 = vlaneseq
    %v1558 = vshrl.u32 %v1557, 7
    %v1559 = vsub.s32 0, %v1558
    %v1560 = vrot.slane %v1555, %v1559
    %v1564 = vunpack.c.l.b16 %v1552
    %v1565 = vunpack.c.l.b16 %v1553
    %v1566 = vpack.c.b16 %v1565, %v1564
    %vm1567 = vcmask 130048
    %v1569 = vsel %vm1567, %v1566, 0
    %1571 = vmatprep.subr.bf16.mxu0 0
    %1572 = vmatpush1.bf16.msra.mxu0 0
    %1573 = vmatprep.subr.bf16.mxu0 0
    %1574 = vmatpush1.bf16.msra.mxu0 0
    %1575 = vmatprep.subr.bf16.mxu0 0
    %1576 = vmatpush1.bf16.msra.mxu0 0
    %1577 = vmatprep.subr.bf16.mxu0 0
    %1578 = vmatpush1.bf16.msra.mxu0 0
    %1579 = vmatprep.subr.bf16.mxu0 0
    %1580 = vmatpush1.bf16.msra.mxu0 0
    %1581 = vmatprep.subr.bf16.mxu0 0
    %1582 = vmatpush1.bf16.msra.mxu0 0
    %1583 = vmatprep.subr.bf16.mxu0 0
    %1584 = vmatpush1.bf16.msra.mxu0 0
    %1585 = vmatprep.subr.bf16.mxu0 0
    %1586 = vmatpush1.bf16.msra.mxu0 %v1554
    %1587 = vmatprep.subr.bf16.mxu0 0
    %1588 = vmatpush2.bf16.msra.mxu0 0
    %1589 = vmatprep.subr.bf16.mxu0 0
    %1590 = vmatpush2.bf16.msra.mxu0 0
    %1591 = vmatprep.subr.bf16.mxu0 0
    %1592 = vmatpush2.bf16.msra.mxu0 0
    %1593 = vmatprep.subr.bf16.mxu0 0
    %1594 = vmatpush2.bf16.msra.mxu0 0
    %1595 = vmatprep.subr.bf16.mxu0 0
    %1596 = vmatpush2.bf16.msra.mxu0 0
    %1597 = vmatprep.subr.bf16.mxu0 0
    %1598 = vmatpush2.bf16.msra.mxu0 0
    %1599 = vmatprep.subr.bf16.mxu0 0
    %1600 = vmatpush2.bf16.msra.mxu0 0
    %1601 = vmatprep.subr.bf16.mxu0 0
    %1602 = vmatpush2.bf16.msra.mxu0 0
    %1603 = vmatprep.mubr.bf16.mxu0 0
    %1604 = vmatmul.mubr.bf16.gmra.mxu0 %v1569
    %v1605 = vpop.f32.mrf.mxu0
    %v1606 = vadd.f32 %v1560, %v1605
    %v1607 = vpop.f32.mrf.mxu0
    %v1608 = vpop.f32.mrf.mxu0
    %v1609 = vadd.f32 %v1560, %v1608
    %v1610 = vpop.f32.mrf.mxu0
    %1611 = vdwg.mxu0
    %v1612 = vmax.f32 %v1606, 0.0
    %v1613 = vmax.f32 %v1609, 0.0
    %v1614 = vpack.c.bf16 %v1613, %v1612
    %v1615 = vld [vmem:[%s14] sm:$0xf]
    %v1616 = vld [vmem:[%s14 + $0x4] sm:$0xf]
    %v1619 = vunpack.c.l.b16 %v1615
    %v1620 = vunpack.c.l.b16 %v1616
    %v1621 = vpack.c.b16 %v1620, %v1619
    %v1624 = vsel %vm1567, %v1614, 0
    %1626 = vmatprep.subr.bf16.mxu0 0
    %1627 = vmatpush1.bf16.msra.mxu0 0
    %1628 = vmatprep.subr.bf16.mxu0 0
    %1629 = vmatpush1.bf16.msra.mxu0 0
    %1630 = vmatprep.subr.bf16.mxu0 0
    %1631 = vmatpush1.bf16.msra.mxu0 0
    %1632 = vmatprep.subr.bf16.mxu0 0
    %1633 = vmatpush1.bf16.msra.mxu0 0
    %1634 = vmatprep.subr.bf16.mxu0 0
    %1635 = vmatpush1.bf16.msra.mxu0 0
    %1636 = vmatprep.subr.bf16.mxu0 0
    %1637 = vmatpush1.bf16.msra.mxu0 0
    %1638 = vmatprep.subr.bf16.mxu0 0
    %1639 = vmatpush1.bf16.msra.mxu0 0
    %1640 = vmatprep.subr.bf16.mxu0 0
    %1641 = vmatpush1.bf16.msra.mxu0 %v1621
    %1642 = vmatprep.subr.bf16.mxu0 0
    %1643 = vmatpush2.bf16.msra.mxu0 0
    %1644 = vmatprep.subr.bf16.mxu0 0
    %1645 = vmatpush2.bf16.msra.mxu0 0
    %1646 = vmatprep.subr.bf16.mxu0 0
    %1647 = vmatpush2.bf16.msra.mxu0 0
    %1648 = vmatprep.subr.bf16.mxu0 0
    %1649 = vmatpush2.bf16.msra.mxu0 0
    %1650 = vmatprep.subr.bf16.mxu0 0
    %1651 = vmatpush2.bf16.msra.mxu0 0
    %1652 = vmatprep.subr.bf16.mxu0 0
    %1653 = vmatpush2.bf16.msra.mxu0 0
    %1654 = vmatprep.subr.bf16.mxu0 0
    %1655 = vmatpush2.bf16.msra.mxu0 0
    %1656 = vmatprep.subr.bf16.mxu0 0
    %1657 = vmatpush2.bf16.msra.mxu0 0
    %1658 = vmatprep.mubr.bf16.mxu0 0
    %1659 = vmatmul.mubr.bf16.gmra.mxu0 %v1624
    %v1660 = vpop.f32.mrf.mxu0
    %v1661 = vadd.f32 0.0, %v1660
    %v1662 = vpop.f32.mrf.mxu0
    %v1663 = vpop.f32.mrf.mxu0
    %v1664 = vadd.f32 0.0, %v1663
    %v1665 = vpop.f32.mrf.mxu0
    %1666 = vdwg.mxu0
    %v1667 = vpack.c.bf16 %v1664, %v1661
    %v1668 = vld [vmem:[%s15] sm:$0x1]
    %v1670 = vlaneseq
    %v1671 = vshrl.u32 %v1670, 7
    %v1672 = vsub.s32 0, %v1671
    %v1673 = vrot.slane %v1668, %v1672
    %1675 = vmatprep.subr.bf16.mxu0 0
    %1676 = vmatpush1.bf16.msra.mxu0 0
    %1677 = vmatprep.subr.bf16.mxu0 0
    %1678 = vmatpush1.bf16.msra.mxu0 0
    %1679 = vmatprep.subr.bf16.mxu0 0
    %1680 = vmatpush1.bf16.msra.mxu0 0
    %1681 = vmatprep.subr.bf16.mxu0 0
    %1682 = vmatpush1.bf16.msra.mxu0 0
    %1683 = vmatprep.subr.bf16.mxu0 0
    %1684 = vmatpush1.bf16.msra.mxu0 0
    %1685 = vmatprep.subr.bf16.mxu0 0
    %1686 = vmatpush1.bf16.msra.mxu0 0
    %1687 = vmatprep.subr.bf16.mxu0 0
    %1688 = vmatpush1.bf16.msra.mxu0 0
    %1689 = vmatprep.subr.bf16.mxu0 0
    %1690 = vmatpush1.bf16.msra.mxu0 %v1667
    %1691 = vmatprep.subr.bf16.mxu0 0
    %1692 = vmatpush2.bf16.msra.mxu0 0
    %1693 = vmatprep.subr.bf16.mxu0 0
    %1694 = vmatpush2.bf16.msra.mxu0 0
    %1695 = vmatprep.subr.bf16.mxu0 0
    %1696 = vmatpush2.bf16.msra.mxu0 0
    %1697 = vmatprep.subr.bf16.mxu0 0
    %1698 = vmatpush2.bf16.msra.mxu0 0
    %1699 = vmatprep.subr.bf16.mxu0 0
    %1700 = vmatpush2.bf16.msra.mxu0 0
    %1701 = vmatprep.subr.bf16.mxu0 0
    %1702 = vmatpush2.bf16.msra.mxu0 0
    %1703 = vmatprep.subr.bf16.mxu0 0
    %1704 = vmatpush2.bf16.msra.mxu0 0
    %1705 = vmatprep.subr.bf16.mxu0 0
    %1706 = vmatpush2.bf16.msra.mxu0 0
    %1707 = vmatprep.mubr.bf16.mxu0 0
    %1708 = vmatmul.mubr.bf16.gmra.mxu0 %v1569
    %v1709 = vpop.f32.mrf.mxu0
    %v1710 = vadd.f32 %v1673, %v1709
    %v1711 = vpop.f32.mrf.mxu0
    %v1712 = vpop.f32.mrf.mxu0
    %v1713 = vadd.f32 %v1673, %v1712
    %v1714 = vpop.f32.mrf.mxu0
    %1715 = vdwg.mxu0
    %vm1716 = vcmask 64512
    %1717 = vst.msk [vmem:[%s16] sm:$0xff] %vm1716, %v1710
    %1718 = vst.msk [vmem:[%s16 + $0x8] sm:$0xff] %vm1716, %v1713
    // Predicated region
    $region70: #{pmesp_forward.1} parent=1 // pred_check
      _
    $region71: #{pmesp_forward.1} parent=1 // pred_check_branch
      %1720 = sbr.rel (0) target = $region73
    $region72: #{pmesp_forward.1} parent=1 // pred_region
      _
    $region73: #{pmesp_forward.1} parent=1 // pred_fallthru
      _
    // Predicated region
    $region74: #{pmesp_forward.1} parent=1 // pred_check
      _
    $region75: #{pmesp_forward.1} parent=1 // pred_check_branch
      %1722 = sbr.rel (0) target = $region77
    $region76: #{pmesp_forward.1} parent=1 // pred_region
      _
    $region77: #{pmesp_forward.1} parent=1 // pred_fallthru
      _
    %1723 = vsyncpa [#allocation3], 1

</llo_original>
